<compile_context>
chip_gen: v5e
topology: v5e:2x2
jax: 0.10.0
libtpu: 0.0.40
codegen_flags: <defaults>
</compile_context>

<pallas_src>
import functools

import jax
import jax.numpy as jnp
from jax import lax
from jax.experimental import pallas as pl
from jax.experimental.pallas import tpu as pltpu


# ---------------------------------------------------------------------------
# Fused kernel: input projection -> unrolled time recurrence -> select row ->
# Linear.  No grid; everything stays VMEM/vreg resident.
# ---------------------------------------------------------------------------
def _lstm_fused_kernel(x_ref, wih_ref, whh_ref, b_ref, wlin_ref, blin_ref,
                       out_ref, xproj_scr,
                       *, seq_len, batch_pad, input_size, last_row):
    HP = whh_ref.shape[0]       # padded hidden size (128)
    NP = batch_pad
    rows = seq_len * NP

    # One-time, non-recurrent input projection + bias.  K == input_size is
    # tiny (2), so use VPU broadcast-FMAs instead of an MXU matmul:
    #   xproj[r, :] = sum_d x[r, d] * W_ih[d, :] + b
    x = x_ref[...]                                         # (L*NP, I) f32
    xp = x[:, 0:1] * wih_ref[0:1, :]                       # (L*NP, 4HP)
    for d in range(1, input_size):
        xp = xp + x[:, d:d + 1] * wih_ref[d:d + 1, :]
    xproj_scr[...] = xp + b_ref[...]

    h = jnp.zeros((NP, HP), jnp.float32)
    c = jnp.zeros((NP, HP), jnp.float32)
    last_rows = []

    # seq_len is a small static constant: fully unroll the recurrence.
    for t in range(seq_len):
        # gates: precomputed x-projection row block + recurrent bf16 matmul
        # (f32 accumulation).  Static slice offsets -> unmasked addressing.
        gates = xproj_scr[t * NP:(t + 1) * NP, :] + jnp.dot(
            h.astype(jnp.bfloat16), whh_ref[...],
            preferred_element_type=jnp.float32)
        # PyTorch gate order (i, f, g, o); slices are 128-lane aligned.
        # i/f/o pre-activations were pre-scaled by 0.5 host-side, so
        # sigmoid(z) == 0.5*tanh(z/2) + 0.5 is a single tanh + FMA here.
        i_g = 0.5 * jnp.tanh(gates[:, 0 * HP:1 * HP]) + 0.5
        f_g = 0.5 * jnp.tanh(gates[:, 1 * HP:2 * HP]) + 0.5
        g_g = jnp.tanh(gates[:, 2 * HP:3 * HP])
        o_g = 0.5 * jnp.tanh(gates[:, 3 * HP:4 * HP]) + 0.5
        c = f_g * c + i_g * g_g
        h = o_g * jnp.tanh(c)
        # lstm_out[:, -1, :] semantics: last ORIGINAL batch row per time step.
        # Kept as a value (static slice); not on the recurrence critical path.
        last_rows.append(h[last_row:last_row + 1, :])

    # Fused select + Linear; lane-dense (L, 128) output, sliced outside.
    lasth = jnp.concatenate(last_rows, axis=0)             # (L, HP) f32
    out_ref[...] = (
        jnp.dot(lasth, wlin_ref[...], preferred_element_type=jnp.float32)
        + blin_ref[...]
    )


def lstm_model_forward(x, padded_params, out_size, batch_pad=8):
    """x: (L, N, I); padded params; returns (L, out_size)."""
    wih_p, whh_p, b_p, wlin_p, blin_p = padded_params
    L, N, I = x.shape
    HP = whh_p.shape[0]
    OP = wlin_p.shape[1]
    NP = batch_pad

    # Pad batch to a full sublane tile; padded rows are never read back.
    # TODO(synk): if many independent sequences are processed, pack them into
    # this batch dimension instead of zero padding 2 -> 8.
    x_pad = jnp.zeros((L, NP, I), x.dtype).at[:, :N, :].set(x)
    x_flat = x_pad.reshape(L * NP, I)

    kernel = functools.partial(
        _lstm_fused_kernel, seq_len=L, batch_pad=NP, input_size=I,
        last_row=N - 1)

    out_padded = pl.pallas_call(
        kernel,
        out_shape=jax.ShapeDtypeStruct((L, OP), jnp.float32),
        scratch_shapes=[
            pltpu.VMEM((L * NP, 4 * HP), jnp.float32),  # hoisted x-projection
        ],
    )(x_flat, wih_p, whh_p, b_p, wlin_p, blin_p)
    return out_padded[:, :out_size]


# ---------------------------------------------------------------------------
# Parameter padding: H=100 -> HP=128 per gate block, O=2 -> OP=128.
# Padded rows/cols are zero, so padded hidden lanes stay exactly 0.
# i/f/o gate columns are pre-scaled by 0.5 (sigmoid-as-tanh fold); W_hh is
# stored bf16 for the MXU.
# ---------------------------------------------------------------------------
def _pad_gate_cols(w, H, HP):
    """(rows, 4H) gate-contiguous -> (rows, 4*HP), zero padded per gate."""
    rows = w.shape[0]
    out = jnp.zeros((rows, 4 * HP), jnp.float32)
    for k in range(4):
        out = out.at[:, k * HP:k * HP + H].set(w[:, k * H:(k + 1) * H])
    return out


def build_padded_params(w_ih, w_hh, b_ih, b_hh, w_lin, b_lin, HP=128, OP=128):
    H = w_hh.shape[1]
    O = w_lin.shape[0]
    # 0.5 pre-scale on i/f/o gate blocks (PyTorch order i, f, g, o) so that
    # sigmoid(z) = 0.5*tanh(z/2)+0.5 is a single tanh + FMA in the kernel.
    gate_scale = jnp.concatenate([
        jnp.full((HP,), 0.5, jnp.float32),   # i
        jnp.full((HP,), 0.5, jnp.float32),   # f
        jnp.ones((HP,), jnp.float32),        # g (unscaled, plain tanh)
        jnp.full((HP,), 0.5, jnp.float32),   # o
    ]).reshape(1, 4 * HP)

    wih_p = _pad_gate_cols(w_ih.T, H, HP) * gate_scale                  # (I, 4HP) f32
    whh_p = jnp.zeros((HP, 4 * HP), jnp.float32)
    whh_p = whh_p.at[:H, :].set(_pad_gate_cols(w_hh.T, H, HP))
    whh_p = (whh_p * gate_scale).astype(jnp.bfloat16)                   # (HP, 4HP) bf16
    b_p = _pad_gate_cols((b_ih + b_hh).reshape(1, 4 * H), H, HP) * gate_scale
    wlin_p = jnp.zeros((HP, OP), jnp.float32).at[:H, :O].set(w_lin.T)
    blin_p = jnp.zeros((1, OP), jnp.float32).at[:, :O].set(b_lin.reshape(1, O))
    return wih_p, whh_p, b_p, wlin_p, blin_p


# ---------------------------------------------------------------------------
# Pure-JAX reference (lax.scan, unpadded f32 params) for correctness check.
# ---------------------------------------------------------------------------
def ref_forward(x, raw_params):
    w_ih, w_hh, b_ih, b_hh, w_lin, b_lin = raw_params
    H = w_hh.shape[1]
    N = x.shape[1]
    w_ih_t, w_hh_t = w_ih.T, w_hh.T
    b = (b_ih + b_hh).reshape(1, 4 * H)

    def step(carry, x_t):
        h, c = carry
        gates = x_t @ w_ih_t + h @ w_hh_t + b
        i_g = jax.nn.sigmoid(gates[:, 0 * H:1 * H])
        f_g = jax.nn.sigmoid(gates[:, 1 * H:2 * H])
        g_g = jnp.tanh(gates[:, 2 * H:3 * H])
        o_g = jax.nn.sigmoid(gates[:, 3 * H:4 * H])
        c_n = f_g * c + i_g * g_g
        h_n = o_g * jnp.tanh(c_n)
        return (h_n, c_n), h_n

    h0 = jnp.zeros((N, H), jnp.float32)
    c0 = jnp.zeros((N, H), jnp.float32)
    _, outs = lax.scan(step, (h0, c0), x)          # (L, N, H)
    last = outs[:, -1, :]                          # last batch row per step
    return last @ w_lin.T + b_lin.reshape(1, -1)


if __name__ == "__main__":
    L, N, INPUT, HIDDEN, OUT = 8, 2, 2, 100, 2

    key = jax.random.PRNGKey(0)
    ks = jax.random.split(key, 8)
    bound = 1.0 / (HIDDEN ** 0.5)

    # PyTorch-shaped parameters, deterministically initialized.
    w_ih = jax.random.uniform(ks[0], (4 * HIDDEN, INPUT), jnp.float32, -bound, bound)
    w_hh = jax.random.uniform(ks[1], (4 * HIDDEN, HIDDEN), jnp.float32, -bound, bound)
    b_ih = jax.random.uniform(ks[2], (4 * HIDDEN,), jnp.float32, -bound, bound)
    b_hh = jax.random.uniform(ks[3], (4 * HIDDEN,), jnp.float32, -bound, bound)
    w_lin = jax.random.uniform(ks[4], (OUT, HIDDEN), jnp.float32, -bound, bound)
    b_lin = jax.random.uniform(ks[5], (OUT,), jnp.float32, -bound, bound)

    padded_params = build_padded_params(w_ih, w_hh, b_ih, b_hh, w_lin, b_lin)
    raw_params = (w_ih, w_hh, b_ih, b_hh, w_lin, b_lin)

    x = jax.random.normal(ks[6], (L, N, INPUT), jnp.float32)

    pred = lstm_model_forward(x, padded_params, OUT)
    pred = jax.block_until_ready(pred)

    ref = ref_forward(x, raw_params)
    assert pred.shape == (L, OUT)
    # Tolerance loosened vs. the pure-f32 reference: recurrent matmul uses
    # bf16 operands (f32 accumulation).
    assert jnp.allclose(pred, ref, atol=2e-2, rtol=2e-2), "mismatch vs reference"

    print("KERNEL_OK")
</pallas_src>

<mosaic_0001>
module attributes {stable_mosaic.version = 11 : i64} {
  func.func @_lstm_fused_kernel(%arg0: memref<64x2xf32, #tpu.memory_space<vmem>>, %arg1: memref<2x512xf32, #tpu.memory_space<vmem>>, %arg2: memref<128x512xbf16, #tpu.memory_space<vmem>>, %arg3: memref<1x512xf32, #tpu.memory_space<vmem>>, %arg4: memref<128x128xf32, #tpu.memory_space<vmem>>, %arg5: memref<1x128xf32, #tpu.memory_space<vmem>>, %arg6: memref<8x128xf32, #tpu.memory_space<vmem>>, %arg7: memref<64x512xf32, #tpu.memory_space<vmem>>) attributes {dimension_semantics = [], scalar_prefetch = 0 : i64, scratch_operands = 1 : i64, tpu.core_type = #tpu.core_type<tc>} {
    %c0 = arith.constant 0 : index
    %c0_0 = arith.constant 0 : index
    %0 = vector.load %arg0[%c0, %c0_0] : memref<64x2xf32, #tpu.memory_space<vmem>>, vector<64x2xf32>
    %1 = vector.extract_strided_slice %0 {offsets = [0, 0], sizes = [64, 1], strides = [1, 1]} : vector<64x2xf32> to vector<64x1xf32>
    %c0_1 = arith.constant 0 : index
    %c0_2 = arith.constant 0 : index
    %2 = vector.load %arg1[%c0_1, %c0_2] : memref<2x512xf32, #tpu.memory_space<vmem>>, vector<1x512xf32>
    %3 = vector.broadcast %1 : vector<64x1xf32> to vector<64x512xf32>
    %4 = vector.broadcast %2 : vector<1x512xf32> to vector<64x512xf32>
    %5 = arith.mulf %3, %4 : vector<64x512xf32>
    %6 = vector.extract_strided_slice %0 {offsets = [0, 1], sizes = [64, 1], strides = [1, 1]} : vector<64x2xf32> to vector<64x1xf32>
    %c1 = arith.constant 1 : index
    %c0_3 = arith.constant 0 : index
    %7 = vector.load %arg1[%c1, %c0_3] : memref<2x512xf32, #tpu.memory_space<vmem>>, vector<1x512xf32>
    %8 = vector.broadcast %6 : vector<64x1xf32> to vector<64x512xf32>
    %9 = vector.broadcast %7 : vector<1x512xf32> to vector<64x512xf32>
    %10 = arith.mulf %8, %9 : vector<64x512xf32>
    %11 = arith.addf %5, %10 : vector<64x512xf32>
    %c0_4 = arith.constant 0 : index
    %c0_5 = arith.constant 0 : index
    %12 = vector.load %arg3[%c0_4, %c0_5] : memref<1x512xf32, #tpu.memory_space<vmem>>, vector<1x512xf32>
    %13 = vector.broadcast %12 : vector<1x512xf32> to vector<64x512xf32>
    %14 = arith.addf %11, %13 : vector<64x512xf32>
    %c0_6 = arith.constant 0 : index
    %c0_7 = arith.constant 0 : index
    %15 = vector.load %arg7[%c0_6, %c0_7] : memref<64x512xf32, #tpu.memory_space<vmem>>, vector<64x512xf32>
    tpu.vector_store %arg7[%c0_6, %c0_7], %14 {strides = array<i32>} : memref<64x512xf32, #tpu.memory_space<vmem>>, vector<64x512xf32>,
    %cst = arith.constant 0.000000e+00 : f32
    %16 = vector.broadcast %cst : f32 to vector<8x128xf32>
    %cst_8 = arith.constant 0.000000e+00 : f32
    %17 = vector.broadcast %cst_8 : f32 to vector<8x128xf32>
    %c0_9 = arith.constant 0 : index
    %c0_10 = arith.constant 0 : index
    %18 = vector.load %arg7[%c0_9, %c0_10] : memref<64x512xf32, #tpu.memory_space<vmem>>, vector<8x512xf32>
    %19 = arith.truncf %16 : vector<8x128xf32> to vector<8x128xbf16>
    %c0_11 = arith.constant 0 : index
    %c0_12 = arith.constant 0 : index
    %20 = vector.load %arg2[%c0_11, %c0_12] : memref<128x512xbf16, #tpu.memory_space<vmem>>, vector<128x512xbf16>
    %cst_13 = arith.constant dense<0.000000e+00> : vector<8x512xf32>
    %21 = tpu.matmul %19, %20, %cst_13 {dimension_numbers = #tpu.dot_dimension_numbers<[1], [0], [0], [1], [0, 0, 1, 1], [], []>} : vector<8x128xbf16>, vector<128x512xbf16>, vector<8x512xf32> -> vector<8x512xf32>
    %22 = arith.addf %18, %21 : vector<8x512xf32>
    %23 = vector.extract_strided_slice %22 {offsets = [0, 0], sizes = [8, 128], strides = [1, 1]} : vector<8x512xf32> to vector<8x128xf32>
    %24 = math.tanh %23 : vector<8x128xf32>
    %cst_14 = arith.constant 5.000000e-01 : f32
    %25 = vector.broadcast %cst_14 : f32 to vector<8x128xf32>
    %26 = arith.mulf %25, %24 : vector<8x128xf32>
    %cst_15 = arith.constant 5.000000e-01 : f32
    %27 = vector.broadcast %cst_15 : f32 to vector<8x128xf32>
    %28 = arith.addf %26, %27 : vector<8x128xf32>
    %29 = vector.extract_strided_slice %22 {offsets = [0, 128], sizes = [8, 128], strides = [1, 1]} : vector<8x512xf32> to vector<8x128xf32>
    %30 = math.tanh %29 : vector<8x128xf32>
    %cst_16 = arith.constant 5.000000e-01 : f32
    %31 = vector.broadcast %cst_16 : f32 to vector<8x128xf32>
    %32 = arith.mulf %31, %30 : vector<8x128xf32>
    %cst_17 = arith.constant 5.000000e-01 : f32
    %33 = vector.broadcast %cst_17 : f32 to vector<8x128xf32>
    %34 = arith.addf %32, %33 : vector<8x128xf32>
    %35 = vector.extract_strided_slice %22 {offsets = [0, 256], sizes = [8, 128], strides = [1, 1]} : vector<8x512xf32> to vector<8x128xf32>
    %36 = math.tanh %35 : vector<8x128xf32>
    %37 = vector.extract_strided_slice %22 {offsets = [0, 384], sizes = [8, 128], strides = [1, 1]} : vector<8x512xf32> to vector<8x128xf32>
    %38 = math.tanh %37 : vector<8x128xf32>
    %cst_18 = arith.constant 5.000000e-01 : f32
    %39 = vector.broadcast %cst_18 : f32 to vector<8x128xf32>
    %40 = arith.mulf %39, %38 : vector<8x128xf32>
    %cst_19 = arith.constant 5.000000e-01 : f32
    %41 = vector.broadcast %cst_19 : f32 to vector<8x128xf32>
    %42 = arith.addf %40, %41 : vector<8x128xf32>
    %43 = arith.mulf %34, %17 : vector<8x128xf32>
    %44 = arith.mulf %28, %36 : vector<8x128xf32>
    %45 = arith.addf %43, %44 : vector<8x128xf32>
    %46 = math.tanh %45 : vector<8x128xf32>
    %47 = arith.mulf %42, %46 : vector<8x128xf32>
    %48 = vector.extract_strided_slice %47 {offsets = [1, 0], sizes = [1, 128], strides = [1, 1]} : vector<8x128xf32> to vector<1x128xf32>
    %c8 = arith.constant 8 : index
    %c0_20 = arith.constant 0 : index
    %49 = vector.load %arg7[%c8, %c0_20] : memref<64x512xf32, #tpu.memory_space<vmem>>, vector<8x512xf32>
    %50 = arith.truncf %47 : vector<8x128xf32> to vector<8x128xbf16>
    %c0_21 = arith.constant 0 : index
    %c0_22 = arith.constant 0 : index
    %51 = vector.load %arg2[%c0_21, %c0_22] : memref<128x512xbf16, #tpu.memory_space<vmem>>, vector<128x512xbf16>
    %cst_23 = arith.constant dense<0.000000e+00> : vector<8x512xf32>
    %52 = tpu.matmul %50, %51, %cst_23 {dimension_numbers = #tpu.dot_dimension_numbers<[1], [0], [0], [1], [0, 0, 1, 1], [], []>} : vector<8x128xbf16>, vector<128x512xbf16>, vector<8x512xf32> -> vector<8x512xf32>
    %53 = arith.addf %49, %52 : vector<8x512xf32>
    %54 = vector.extract_strided_slice %53 {offsets = [0, 0], sizes = [8, 128], strides = [1, 1]} : vector<8x512xf32> to vector<8x128xf32>
    %55 = math.tanh %54 : vector<8x128xf32>
    %cst_24 = arith.constant 5.000000e-01 : f32
    %56 = vector.broadcast %cst_24 : f32 to vector<8x128xf32>
    %57 = arith.mulf %56, %55 : vector<8x128xf32>
    %cst_25 = arith.constant 5.000000e-01 : f32
    %58 = vector.broadcast %cst_25 : f32 to vector<8x128xf32>
    %59 = arith.addf %57, %58 : vector<8x128xf32>
    %60 = vector.extract_strided_slice %53 {offsets = [0, 128], sizes = [8, 128], strides = [1, 1]} : vector<8x512xf32> to vector<8x128xf32>
    %61 = math.tanh %60 : vector<8x128xf32>
    %cst_26 = arith.constant 5.000000e-01 : f32
    %62 = vector.broadcast %cst_26 : f32 to vector<8x128xf32>
    %63 = arith.mulf %62, %61 : vector<8x128xf32>
    %cst_27 = arith.constant 5.000000e-01 : f32
    %64 = vector.broadcast %cst_27 : f32 to vector<8x128xf32>
    %65 = arith.addf %63, %64 : vector<8x128xf32>
    %66 = vector.extract_strided_slice %53 {offsets = [0, 256], sizes = [8, 128], strides = [1, 1]} : vector<8x512xf32> to vector<8x128xf32>
    %67 = math.tanh %66 : vector<8x128xf32>
    %68 = vector.extract_strided_slice %53 {offsets = [0, 384], sizes = [8, 128], strides = [1, 1]} : vector<8x512xf32> to vector<8x128xf32>
    %69 = math.tanh %68 : vector<8x128xf32>
    %cst_28 = arith.constant 5.000000e-01 : f32
    %70 = vector.broadcast %cst_28 : f32 to vector<8x128xf32>
    %71 = arith.mulf %70, %69 : vector<8x128xf32>
    %cst_29 = arith.constant 5.000000e-01 : f32
    %72 = vector.broadcast %cst_29 : f32 to vector<8x128xf32>
    %73 = arith.addf %71, %72 : vector<8x128xf32>
    %74 = arith.mulf %65, %45 : vector<8x128xf32>
    %75 = arith.mulf %59, %67 : vector<8x128xf32>
    %76 = arith.addf %74, %75 : vector<8x128xf32>
    %77 = math.tanh %76 : vector<8x128xf32>
    %78 = arith.mulf %73, %77 : vector<8x128xf32>
    %79 = vector.extract_strided_slice %78 {offsets = [1, 0], sizes = [1, 128], strides = [1, 1]} : vector<8x128xf32> to vector<1x128xf32>
    %c16 = arith.constant 16 : index
    %c0_30 = arith.constant 0 : index
    %80 = vector.load %arg7[%c16, %c0_30] : memref<64x512xf32, #tpu.memory_space<vmem>>, vector<8x512xf32>
    %81 = arith.truncf %78 : vector<8x128xf32> to vector<8x128xbf16>
    %c0_31 = arith.constant 0 : index
    %c0_32 = arith.constant 0 : index
    %82 = vector.load %arg2[%c0_31, %c0_32] : memref<128x512xbf16, #tpu.memory_space<vmem>>, vector<128x512xbf16>
    %cst_33 = arith.constant dense<0.000000e+00> : vector<8x512xf32>
    %83 = tpu.matmul %81, %82, %cst_33 {dimension_numbers = #tpu.dot_dimension_numbers<[1], [0], [0], [1], [0, 0, 1, 1], [], []>} : vector<8x128xbf16>, vector<128x512xbf16>, vector<8x512xf32> -> vector<8x512xf32>
    %84 = arith.addf %80, %83 : vector<8x512xf32>
    %85 = vector.extract_strided_slice %84 {offsets = [0, 0], sizes = [8, 128], strides = [1, 1]} : vector<8x512xf32> to vector<8x128xf32>
    %86 = math.tanh %85 : vector<8x128xf32>
    %cst_34 = arith.constant 5.000000e-01 : f32
    %87 = vector.broadcast %cst_34 : f32 to vector<8x128xf32>
    %88 = arith.mulf %87, %86 : vector<8x128xf32>
    %cst_35 = arith.constant 5.000000e-01 : f32
    %89 = vector.broadcast %cst_35 : f32 to vector<8x128xf32>
    %90 = arith.addf %88, %89 : vector<8x128xf32>
    %91 = vector.extract_strided_slice %84 {offsets = [0, 128], sizes = [8, 128], strides = [1, 1]} : vector<8x512xf32> to vector<8x128xf32>
    %92 = math.tanh %91 : vector<8x128xf32>
    %cst_36 = arith.constant 5.000000e-01 : f32
    %93 = vector.broadcast %cst_36 : f32 to vector<8x128xf32>
    %94 = arith.mulf %93, %92 : vector<8x128xf32>
    %cst_37 = arith.constant 5.000000e-01 : f32
    %95 = vector.broadcast %cst_37 : f32 to vector<8x128xf32>
    %96 = arith.addf %94, %95 : vector<8x128xf32>
    %97 = vector.extract_strided_slice %84 {offsets = [0, 256], sizes = [8, 128], strides = [1, 1]} : vector<8x512xf32> to vector<8x128xf32>
    %98 = math.tanh %97 : vector<8x128xf32>
    %99 = vector.extract_strided_slice %84 {offsets = [0, 384], sizes = [8, 128], strides = [1, 1]} : vector<8x512xf32> to vector<8x128xf32>
    %100 = math.tanh %99 : vector<8x128xf32>
    %cst_38 = arith.constant 5.000000e-01 : f32
    %101 = vector.broadcast %cst_38 : f32 to vector<8x128xf32>
    %102 = arith.mulf %101, %100 : vector<8x128xf32>
    %cst_39 = arith.constant 5.000000e-01 : f32
    %103 = vector.broadcast %cst_39 : f32 to vector<8x128xf32>
    %104 = arith.addf %102, %103 : vector<8x128xf32>
    %105 = arith.mulf %96, %76 : vector<8x128xf32>
    %106 = arith.mulf %90, %98 : vector<8x128xf32>
    %107 = arith.addf %105, %106 : vector<8x128xf32>
    %108 = math.tanh %107 : vector<8x128xf32>
    %109 = arith.mulf %104, %108 : vector<8x128xf32>
    %110 = vector.extract_strided_slice %109 {offsets = [1, 0], sizes = [1, 128], strides = [1, 1]} : vector<8x128xf32> to vector<1x128xf32>
    %c24 = arith.constant 24 : index
    %c0_40 = arith.constant 0 : index
    %111 = vector.load %arg7[%c24, %c0_40] : memref<64x512xf32, #tpu.memory_space<vmem>>, vector<8x512xf32>
    %112 = arith.truncf %109 : vector<8x128xf32> to vector<8x128xbf16>
    %c0_41 = arith.constant 0 : index
    %c0_42 = arith.constant 0 : index
    %113 = vector.load %arg2[%c0_41, %c0_42] : memref<128x512xbf16, #tpu.memory_space<vmem>>, vector<128x512xbf16>
    %cst_43 = arith.constant dense<0.000000e+00> : vector<8x512xf32>
    %114 = tpu.matmul %112, %113, %cst_43 {dimension_numbers = #tpu.dot_dimension_numbers<[1], [0], [0], [1], [0, 0, 1, 1], [], []>} : vector<8x128xbf16>, vector<128x512xbf16>, vector<8x512xf32> -> vector<8x512xf32>
    %115 = arith.addf %111, %114 : vector<8x512xf32>
    %116 = vector.extract_strided_slice %115 {offsets = [0, 0], sizes = [8, 128], strides = [1, 1]} : vector<8x512xf32> to vector<8x128xf32>
    %117 = math.tanh %116 : vector<8x128xf32>
    %cst_44 = arith.constant 5.000000e-01 : f32
    %118 = vector.broadcast %cst_44 : f32 to vector<8x128xf32>
    %119 = arith.mulf %118, %117 : vector<8x128xf32>
    %cst_45 = arith.constant 5.000000e-01 : f32
    %120 = vector.broadcast %cst_45 : f32 to vector<8x128xf32>
    %121 = arith.addf %119, %120 : vector<8x128xf32>
    %122 = vector.extract_strided_slice %115 {offsets = [0, 128], sizes = [8, 128], strides = [1, 1]} : vector<8x512xf32> to vector<8x128xf32>
    %123 = math.tanh %122 : vector<8x128xf32>
    %cst_46 = arith.constant 5.000000e-01 : f32
    %124 = vector.broadcast %cst_46 : f32 to vector<8x128xf32>
    %125 = arith.mulf %124, %123 : vector<8x128xf32>
    %cst_47 = arith.constant 5.000000e-01 : f32
    %126 = vector.broadcast %cst_47 : f32 to vector<8x128xf32>
    %127 = arith.addf %125, %126 : vector<8x128xf32>
    %128 = vector.extract_strided_slice %115 {offsets = [0, 256], sizes = [8, 128], strides = [1, 1]} : vector<8x512xf32> to vector<8x128xf32>
    %129 = math.tanh %128 : vector<8x128xf32>
    %130 = vector.extract_strided_slice %115 {offsets = [0, 384], sizes = [8, 128], strides = [1, 1]} : vector<8x512xf32> to vector<8x128xf32>
    %131 = math.tanh %130 : vector<8x128xf32>
    %cst_48 = arith.constant 5.000000e-01 : f32
    %132 = vector.broadcast %cst_48 : f32 to vector<8x128xf32>
    %133 = arith.mulf %132, %131 : vector<8x128xf32>
    %cst_49 = arith.constant 5.000000e-01 : f32
    %134 = vector.broadcast %cst_49 : f32 to vector<8x128xf32>
    %135 = arith.addf %133, %134 : vector<8x128xf32>
    %136 = arith.mulf %127, %107 : vector<8x128xf32>
    %137 = arith.mulf %121, %129 : vector<8x128xf32>
    %138 = arith.addf %136, %137 : vector<8x128xf32>
    %139 = math.tanh %138 : vector<8x128xf32>
    %140 = arith.mulf %135, %139 : vector<8x128xf32>
    %141 = vector.extract_strided_slice %140 {offsets = [1, 0], sizes = [1, 128], strides = [1, 1]} : vector<8x128xf32> to vector<1x128xf32>
    %c32 = arith.constant 32 : index
    %c0_50 = arith.constant 0 : index
    %142 = vector.load %arg7[%c32, %c0_50] : memref<64x512xf32, #tpu.memory_space<vmem>>, vector<8x512xf32>
    %143 = arith.truncf %140 : vector<8x128xf32> to vector<8x128xbf16>
    %c0_51 = arith.constant 0 : index
    %c0_52 = arith.constant 0 : index
    %144 = vector.load %arg2[%c0_51, %c0_52] : memref<128x512xbf16, #tpu.memory_space<vmem>>, vector<128x512xbf16>
    %cst_53 = arith.constant dense<0.000000e+00> : vector<8x512xf32>
    %145 = tpu.matmul %143, %144, %cst_53 {dimension_numbers = #tpu.dot_dimension_numbers<[1], [0], [0], [1], [0, 0, 1, 1], [], []>} : vector<8x128xbf16>, vector<128x512xbf16>, vector<8x512xf32> -> vector<8x512xf32>
    %146 = arith.addf %142, %145 : vector<8x512xf32>
    %147 = vector.extract_strided_slice %146 {offsets = [0, 0], sizes = [8, 128], strides = [1, 1]} : vector<8x512xf32> to vector<8x128xf32>
    %148 = math.tanh %147 : vector<8x128xf32>
    %cst_54 = arith.constant 5.000000e-01 : f32
    %149 = vector.broadcast %cst_54 : f32 to vector<8x128xf32>
    %150 = arith.mulf %149, %148 : vector<8x128xf32>
    %cst_55 = arith.constant 5.000000e-01 : f32
    %151 = vector.broadcast %cst_55 : f32 to vector<8x128xf32>
    %152 = arith.addf %150, %151 : vector<8x128xf32>
    %153 = vector.extract_strided_slice %146 {offsets = [0, 128], sizes = [8, 128], strides = [1, 1]} : vector<8x512xf32> to vector<8x128xf32>
    %154 = math.tanh %153 : vector<8x128xf32>
    %cst_56 = arith.constant 5.000000e-01 : f32
    %155 = vector.broadcast %cst_56 : f32 to vector<8x128xf32>
    %156 = arith.mulf %155, %154 : vector<8x128xf32>
    %cst_57 = arith.constant 5.000000e-01 : f32
    %157 = vector.broadcast %cst_57 : f32 to vector<8x128xf32>
    %158 = arith.addf %156, %157 : vector<8x128xf32>
    %159 = vector.extract_strided_slice %146 {offsets = [0, 256], sizes = [8, 128], strides = [1, 1]} : vector<8x512xf32> to vector<8x128xf32>
    %160 = math.tanh %159 : vector<8x128xf32>
    %161 = vector.extract_strided_slice %146 {offsets = [0, 384], sizes = [8, 128], strides = [1, 1]} : vector<8x512xf32> to vector<8x128xf32>
    %162 = math.tanh %161 : vector<8x128xf32>
    %cst_58 = arith.constant 5.000000e-01 : f32
    %163 = vector.broadcast %cst_58 : f32 to vector<8x128xf32>
    %164 = arith.mulf %163, %162 : vector<8x128xf32>
    %cst_59 = arith.constant 5.000000e-01 : f32
    %165 = vector.broadcast %cst_59 : f32 to vector<8x128xf32>
    %166 = arith.addf %164, %165 : vector<8x128xf32>
    %167 = arith.mulf %158, %138 : vector<8x128xf32>
    %168 = arith.mulf %152, %160 : vector<8x128xf32>
    %169 = arith.addf %167, %168 : vector<8x128xf32>
    %170 = math.tanh %169 : vector<8x128xf32>
    %171 = arith.mulf %166, %170 : vector<8x128xf32>
    %172 = vector.extract_strided_slice %171 {offsets = [1, 0], sizes = [1, 128], strides = [1, 1]} : vector<8x128xf32> to vector<1x128xf32>
    %c40 = arith.constant 40 : index
    %c0_60 = arith.constant 0 : index
    %173 = vector.load %arg7[%c40, %c0_60] : memref<64x512xf32, #tpu.memory_space<vmem>>, vector<8x512xf32>
    %174 = arith.truncf %171 : vector<8x128xf32> to vector<8x128xbf16>
    %c0_61 = arith.constant 0 : index
    %c0_62 = arith.constant 0 : index
    %175 = vector.load %arg2[%c0_61, %c0_62] : memref<128x512xbf16, #tpu.memory_space<vmem>>, vector<128x512xbf16>
    %cst_63 = arith.constant dense<0.000000e+00> : vector<8x512xf32>
    %176 = tpu.matmul %174, %175, %cst_63 {dimension_numbers = #tpu.dot_dimension_numbers<[1], [0], [0], [1], [0, 0, 1, 1], [], []>} : vector<8x128xbf16>, vector<128x512xbf16>, vector<8x512xf32> -> vector<8x512xf32>
    %177 = arith.addf %173, %176 : vector<8x512xf32>
    %178 = vector.extract_strided_slice %177 {offsets = [0, 0], sizes = [8, 128], strides = [1, 1]} : vector<8x512xf32> to vector<8x128xf32>
    %179 = math.tanh %178 : vector<8x128xf32>
    %cst_64 = arith.constant 5.000000e-01 : f32
    %180 = vector.broadcast %cst_64 : f32 to vector<8x128xf32>
    %181 = arith.mulf %180, %179 : vector<8x128xf32>
    %cst_65 = arith.constant 5.000000e-01 : f32
    %182 = vector.broadcast %cst_65 : f32 to vector<8x128xf32>
    %183 = arith.addf %181, %182 : vector<8x128xf32>
    %184 = vector.extract_strided_slice %177 {offsets = [0, 128], sizes = [8, 128], strides = [1, 1]} : vector<8x512xf32> to vector<8x128xf32>
    %185 = math.tanh %184 : vector<8x128xf32>
    %cst_66 = arith.constant 5.000000e-01 : f32
    %186 = vector.broadcast %cst_66 : f32 to vector<8x128xf32>
    %187 = arith.mulf %186, %185 : vector<8x128xf32>
    %cst_67 = arith.constant 5.000000e-01 : f32
    %188 = vector.broadcast %cst_67 : f32 to vector<8x128xf32>
    %189 = arith.addf %187, %188 : vector<8x128xf32>
    %190 = vector.extract_strided_slice %177 {offsets = [0, 256], sizes = [8, 128], strides = [1, 1]} : vector<8x512xf32> to vector<8x128xf32>
    %191 = math.tanh %190 : vector<8x128xf32>
    %192 = vector.extract_strided_slice %177 {offsets = [0, 384], sizes = [8, 128], strides = [1, 1]} : vector<8x512xf32> to vector<8x128xf32>
    %193 = math.tanh %192 : vector<8x128xf32>
    %cst_68 = arith.constant 5.000000e-01 : f32
    %194 = vector.broadcast %cst_68 : f32 to vector<8x128xf32>
    %195 = arith.mulf %194, %193 : vector<8x128xf32>
    %cst_69 = arith.constant 5.000000e-01 : f32
    %196 = vector.broadcast %cst_69 : f32 to vector<8x128xf32>
    %197 = arith.addf %195, %196 : vector<8x128xf32>
    %198 = arith.mulf %189, %169 : vector<8x128xf32>
    %199 = arith.mulf %183, %191 : vector<8x128xf32>
    %200 = arith.addf %198, %199 : vector<8x128xf32>
    %201 = math.tanh %200 : vector<8x128xf32>
    %202 = arith.mulf %197, %201 : vector<8x128xf32>
    %203 = vector.extract_strided_slice %202 {offsets = [1, 0], sizes = [1, 128], strides = [1, 1]} : vector<8x128xf32> to vector<1x128xf32>
    %c48 = arith.constant 48 : index
    %c0_70 = arith.constant 0 : index
    %204 = vector.load %arg7[%c48, %c0_70] : memref<64x512xf32, #tpu.memory_space<vmem>>, vector<8x512xf32>
    %205 = arith.truncf %202 : vector<8x128xf32> to vector<8x128xbf16>
    %c0_71 = arith.constant 0 : index
    %c0_72 = arith.constant 0 : index
    %206 = vector.load %arg2[%c0_71, %c0_72] : memref<128x512xbf16, #tpu.memory_space<vmem>>, vector<128x512xbf16>
    %cst_73 = arith.constant dense<0.000000e+00> : vector<8x512xf32>
    %207 = tpu.matmul %205, %206, %cst_73 {dimension_numbers = #tpu.dot_dimension_numbers<[1], [0], [0], [1], [0, 0, 1, 1], [], []>} : vector<8x128xbf16>, vector<128x512xbf16>, vector<8x512xf32> -> vector<8x512xf32>
    %208 = arith.addf %204, %207 : vector<8x512xf32>
    %209 = vector.extract_strided_slice %208 {offsets = [0, 0], sizes = [8, 128], strides = [1, 1]} : vector<8x512xf32> to vector<8x128xf32>
    %210 = math.tanh %209 : vector<8x128xf32>
    %cst_74 = arith.constant 5.000000e-01 : f32
    %211 = vector.broadcast %cst_74 : f32 to vector<8x128xf32>
    %212 = arith.mulf %211, %210 : vector<8x128xf32>
    %cst_75 = arith.constant 5.000000e-01 : f32
    %213 = vector.broadcast %cst_75 : f32 to vector<8x128xf32>
    %214 = arith.addf %212, %213 : vector<8x128xf32>
    %215 = vector.extract_strided_slice %208 {offsets = [0, 128], sizes = [8, 128], strides = [1, 1]} : vector<8x512xf32> to vector<8x128xf32>
    %216 = math.tanh %215 : vector<8x128xf32>
    %cst_76 = arith.constant 5.000000e-01 : f32
    %217 = vector.broadcast %cst_76 : f32 to vector<8x128xf32>
    %218 = arith.mulf %217, %216 : vector<8x128xf32>
    %cst_77 = arith.constant 5.000000e-01 : f32
    %219 = vector.broadcast %cst_77 : f32 to vector<8x128xf32>
    %220 = arith.addf %218, %219 : vector<8x128xf32>
    %221 = vector.extract_strided_slice %208 {offsets = [0, 256], sizes = [8, 128], strides = [1, 1]} : vector<8x512xf32> to vector<8x128xf32>
    %222 = math.tanh %221 : vector<8x128xf32>
    %223 = vector.extract_strided_slice %208 {offsets = [0, 384], sizes = [8, 128], strides = [1, 1]} : vector<8x512xf32> to vector<8x128xf32>
    %224 = math.tanh %223 : vector<8x128xf32>
    %cst_78 = arith.constant 5.000000e-01 : f32
    %225 = vector.broadcast %cst_78 : f32 to vector<8x128xf32>
    %226 = arith.mulf %225, %224 : vector<8x128xf32>
    %cst_79 = arith.constant 5.000000e-01 : f32
    %227 = vector.broadcast %cst_79 : f32 to vector<8x128xf32>
    %228 = arith.addf %226, %227 : vector<8x128xf32>
    %229 = arith.mulf %220, %200 : vector<8x128xf32>
    %230 = arith.mulf %214, %222 : vector<8x128xf32>
    %231 = arith.addf %229, %230 : vector<8x128xf32>
    %232 = math.tanh %231 : vector<8x128xf32>
    %233 = arith.mulf %228, %232 : vector<8x128xf32>
    %234 = vector.extract_strided_slice %233 {offsets = [1, 0], sizes = [1, 128], strides = [1, 1]} : vector<8x128xf32> to vector<1x128xf32>
    %c56 = arith.constant 56 : index
    %c0_80 = arith.constant 0 : index
    %235 = vector.load %arg7[%c56, %c0_80] : memref<64x512xf32, #tpu.memory_space<vmem>>, vector<8x512xf32>
    %236 = arith.truncf %233 : vector<8x128xf32> to vector<8x128xbf16>
    %c0_81 = arith.constant 0 : index
    %c0_82 = arith.constant 0 : index
    %237 = vector.load %arg2[%c0_81, %c0_82] : memref<128x512xbf16, #tpu.memory_space<vmem>>, vector<128x512xbf16>
    %cst_83 = arith.constant dense<0.000000e+00> : vector<8x512xf32>
    %238 = tpu.matmul %236, %237, %cst_83 {dimension_numbers = #tpu.dot_dimension_numbers<[1], [0], [0], [1], [0, 0, 1, 1], [], []>} : vector<8x128xbf16>, vector<128x512xbf16>, vector<8x512xf32> -> vector<8x512xf32>
    %239 = arith.addf %235, %238 : vector<8x512xf32>
    %240 = vector.extract_strided_slice %239 {offsets = [0, 0], sizes = [8, 128], strides = [1, 1]} : vector<8x512xf32> to vector<8x128xf32>
    %241 = math.tanh %240 : vector<8x128xf32>
    %cst_84 = arith.constant 5.000000e-01 : f32
    %242 = vector.broadcast %cst_84 : f32 to vector<8x128xf32>
    %243 = arith.mulf %242, %241 : vector<8x128xf32>
    %cst_85 = arith.constant 5.000000e-01 : f32
    %244 = vector.broadcast %cst_85 : f32 to vector<8x128xf32>
    %245 = arith.addf %243, %244 : vector<8x128xf32>
    %246 = vector.extract_strided_slice %239 {offsets = [0, 128], sizes = [8, 128], strides = [1, 1]} : vector<8x512xf32> to vector<8x128xf32>
    %247 = math.tanh %246 : vector<8x128xf32>
    %cst_86 = arith.constant 5.000000e-01 : f32
    %248 = vector.broadcast %cst_86 : f32 to vector<8x128xf32>
    %249 = arith.mulf %248, %247 : vector<8x128xf32>
    %cst_87 = arith.constant 5.000000e-01 : f32
    %250 = vector.broadcast %cst_87 : f32 to vector<8x128xf32>
    %251 = arith.addf %249, %250 : vector<8x128xf32>
    %252 = vector.extract_strided_slice %239 {offsets = [0, 256], sizes = [8, 128], strides = [1, 1]} : vector<8x512xf32> to vector<8x128xf32>
    %253 = math.tanh %252 : vector<8x128xf32>
    %254 = vector.extract_strided_slice %239 {offsets = [0, 384], sizes = [8, 128], strides = [1, 1]} : vector<8x512xf32> to vector<8x128xf32>
    %255 = math.tanh %254 : vector<8x128xf32>
    %cst_88 = arith.constant 5.000000e-01 : f32
    %256 = vector.broadcast %cst_88 : f32 to vector<8x128xf32>
    %257 = arith.mulf %256, %255 : vector<8x128xf32>
    %cst_89 = arith.constant 5.000000e-01 : f32
    %258 = vector.broadcast %cst_89 : f32 to vector<8x128xf32>
    %259 = arith.addf %257, %258 : vector<8x128xf32>
    %260 = arith.mulf %251, %231 : vector<8x128xf32>
    %261 = arith.mulf %245, %253 : vector<8x128xf32>
    %262 = arith.addf %260, %261 : vector<8x128xf32>
    %263 = math.tanh %262 : vector<8x128xf32>
    %264 = arith.mulf %259, %263 : vector<8x128xf32>
    %265 = vector.extract_strided_slice %264 {offsets = [1, 0], sizes = [1, 128], strides = [1, 1]} : vector<8x128xf32> to vector<1x128xf32>
    %266 = tpu.concatenate %48, %79, %110, %141, %172, %203, %234, %265 in 0 : vector<1x128xf32>, vector<1x128xf32>, vector<1x128xf32>, vector<1x128xf32>, vector<1x128xf32>, vector<1x128xf32>, vector<1x128xf32>, vector<1x128xf32> -> vector<8x128xf32>
    %c0_90 = arith.constant 0 : index
    %c0_91 = arith.constant 0 : index
    %267 = vector.load %arg4[%c0_90, %c0_91] : memref<128x128xf32, #tpu.memory_space<vmem>>, vector<128x128xf32>
    %cst_92 = arith.constant dense<0.000000e+00> : vector<8x128xf32>
    %268 = tpu.matmul %266, %267, %cst_92 {dimension_numbers = #tpu.dot_dimension_numbers<[1], [0], [0], [1], [0, 0, 1, 1], [], []>} : vector<8x128xf32>, vector<128x128xf32>, vector<8x128xf32> -> vector<8x128xf32>
    %c0_93 = arith.constant 0 : index
    %c0_94 = arith.constant 0 : index
    %269 = vector.load %arg5[%c0_93, %c0_94] : memref<1x128xf32, #tpu.memory_space<vmem>>, vector<1x128xf32>
    %270 = vector.broadcast %269 : vector<1x128xf32> to vector<8x128xf32>
    %271 = arith.addf %268, %270 : vector<8x128xf32>
    %c0_95 = arith.constant 0 : index
    %c0_96 = arith.constant 0 : index
    %272 = vector.load %arg6[%c0_95, %c0_96] : memref<8x128xf32, #tpu.memory_space<vmem>>, vector<8x128xf32>
    tpu.vector_store %arg6[%c0_95, %c0_96], %271 {strides = array<i32>} : memref<8x128xf32, #tpu.memory_space<vmem>>, vector<8x128xf32>,
    return
  }
}

</mosaic_0001>

<llo_original>
// kernel: tpu_custom_call.1
$region0: #{tpu_custom_call.1}
  #allocation0 [shape = 'u32[]', space=smem, size = 0x4, offset = 0x4, fixed_abs, tag = 'smem constant byte address 0x4 - core index']
  #allocation1 [shape = 'u32[72,128]{1,0:T(1,128)}', space=vmem, size = 0x9000, scoped, tag = 'internal scratch']
  #allocation2 [shape = 'f32[64,512]{1,0:T(8,128)}', space=vmem, size = 0x20000, scoped, tag = 'scratch operand']
  %s0 = inlined_call_operand.vmem [shape: f32[64,2], index: 0, kind: input, shape index: {}]
  %s1 = inlined_call_operand.vmem [shape: f32[2,512], index: 1, kind: input, shape index: {}]
  %s2 = inlined_call_operand.hbm [shape: bf16[128,512], index: 2, kind: input, shape index: {}]
  %s3 = inlined_call_operand.vmem [shape: f32[1,512], index: 3, kind: input, shape index: {}]
  %s4 = inlined_call_operand.hbm [shape: f32[128,128], index: 4, kind: input, shape index: {}]
  %s5 = inlined_call_operand.vmem [shape: f32[1,128], index: 5, kind: input, shape index: {}]
  %s6 = inlined_call_operand.hbm [shape: f32[8,128], index: 6, kind: output, shape index: {}]
  %s7 = sld [smem:[#allocation0]]
  $region42: #{tpu_custom_call.1} parent=0
    _
  %s9 = ssub.s32 1, %s7
  %s10 = scalar_select 0, %s9, %s7
  $region1: #{tpu_custom_call.1} parent=0
    #allocation3 [shape = 'u8[131072]{0}', space=vmem, size = 0x20000, scoped, tag = 'input window, operand 2, single buffered']
    #allocation4 [shape = 's32[1]{0}', space=sflag, size = 0x4, scoped, tag = 'scoped memory for tpu_custom_call.1']
    #allocation5 [shape = 's32[1]{0}', space=sflag, size = 0x4, scoped, tag = 'scoped memory for tpu_custom_call.1']
    #allocation6 [shape = 'u8[65536]{0}', space=vmem, size = 0x10000, scoped, tag = 'input window, operand 4, single buffered']
    #allocation7 [shape = 's32[1]{0}', space=sflag, size = 0x4, scoped, tag = 'scoped memory for tpu_custom_call.1']
    #allocation8 [shape = 'u8[4096]{0}', space=vmem, size = 0x1000, scoped, tag = 'output window, operand 0, single buffered']
    %11 = vsyncpa [#allocation4], 0
    %12 = vsyncpa [#allocation7], 0
    %13 = vsyncpa [#allocation5], 0
    // Predicated region
    $region2: #{tpu_custom_call.1} parent=1 // pred_check
      _
    $region3: #{tpu_custom_call.1} parent=1 // pred_check_branch
      %15 = sbr.rel (0) target = $region5
    $region4: #{tpu_custom_call.1} parent=1 // pred_region
      _
    $region5: #{tpu_custom_call.1} parent=1 // pred_fallthru
      _
    // Predicated region
    $region6: #{tpu_custom_call.1} parent=1 // pred_check
      _
    $region7: #{tpu_custom_call.1} parent=1 // pred_check_branch
      %17 = sbr.rel (0) target = $region9
    $region8: #{tpu_custom_call.1} parent=1 // pred_region
      _
    $region9: #{tpu_custom_call.1} parent=1 // pred_fallthru
      _
    // Predicated region
    $region10: #{tpu_custom_call.1} parent=1 // pred_check
      _
    $region11: #{tpu_custom_call.1} parent=1 // pred_check_branch
      %19 = sbr.rel (0) target = $region13
    $region12: #{tpu_custom_call.1} parent=1 // pred_region
      %21 = vsyncadd [#allocation4], 0
      %s22 = sshll.u32 %s2, 4
      %s23 = int_to_ptr.hbm [resolvable:$true] %s22
      %s24 = sshll.u32 [#allocation3], 4
      %s25 = int_to_ptr.vmem [resolvable:$true] %s24
      %30 = dma.hbm_to_vmem [thread:$0]  %s23, 4096, %s25, [#allocation4], 256, 256, 16
    $region13: #{tpu_custom_call.1} parent=1 // pred_fallthru
      _
    // Predicated region
    $region14: #{tpu_custom_call.1} parent=1 // pred_check
      _
    $region15: #{tpu_custom_call.1} parent=1 // pred_check_branch
      %32 = sbr.rel (0) target = $region17
    $region16: #{tpu_custom_call.1} parent=1 // pred_region
      _
    $region17: #{tpu_custom_call.1} parent=1 // pred_fallthru
      _
    // Predicated region
    $region18: #{tpu_custom_call.1} parent=1 // pred_check
      _
    $region19: #{tpu_custom_call.1} parent=1 // pred_check_branch
      %34 = sbr.rel (0) target = $region21
    $region20: #{tpu_custom_call.1} parent=1 // pred_region
      %36 = vsyncadd [#allocation7], 0
      %s37 = sshll.u32 %s4, 4
      %s38 = int_to_ptr.hbm [resolvable:$true] %s37
      %s39 = sshll.u32 [#allocation6], 4
      %s40 = int_to_ptr.vmem [resolvable:$true] %s39
      %45 = dma.hbm_to_vmem [thread:$0]  %s38, 2048, %s40, [#allocation7], 128, 128, 8
    $region21: #{tpu_custom_call.1} parent=1 // pred_fallthru
      _
    // Predicated region
    $region22: #{tpu_custom_call.1} parent=1 // pred_check
      _
    $region23: #{tpu_custom_call.1} parent=1 // pred_check_branch
      %47 = sbr.rel (0) target = $region25
    $region24: #{tpu_custom_call.1} parent=1 // pred_region
      _
    $region25: #{tpu_custom_call.1} parent=1 // pred_fallthru
      _
    // Predicated region
    $region26: #{tpu_custom_call.1} parent=1 // pred_check
      _
    $region27: #{tpu_custom_call.1} parent=1 // pred_check_branch
      %49 = sbr.rel (0) target = $region29
    $region28: #{tpu_custom_call.1} parent=1 // pred_region
      %51 = dma.done [#allocation4], 4096
    $region29: #{tpu_custom_call.1} parent=1 // pred_fallthru
      _
    // Predicated region
    $region30: #{tpu_custom_call.1} parent=1 // pred_check
      _
    $region31: #{tpu_custom_call.1} parent=1 // pred_check_branch
      %53 = sbr.rel (0) target = $region33
    $region32: #{tpu_custom_call.1} parent=1 // pred_region
      %55 = dma.done [#allocation7], 2048
    $region33: #{tpu_custom_call.1} parent=1 // pred_fallthru
      _
    %v57 = vld [vmem:[%s0] sm:$0xff]
    %v58 = vld [vmem:[%s0 + $0x8] sm:$0xff]
    %v59 = vld [vmem:[%s0 + $0x10] sm:$0xff]
    %v60 = vld [vmem:[%s0 + $0x18] sm:$0xff]
    %v61 = vld [vmem:[%s0 + $0x20] sm:$0xff]
    %v62 = vld [vmem:[%s0 + $0x28] sm:$0xff]
    %v63 = vld [vmem:[%s0 + $0x30] sm:$0xff]
    %v64 = vld [vmem:[%s0 + $0x38] sm:$0xff]
    %v65 = vld [vmem:[%s1] ss:$2 sm:$0xf]
    %67 = vset.pattern.permute.xlu0 0
    %68 = vperm.xlu0 %67, %v57
    %v69 = vpop.permute.xlu0 %68
    %72 = vset.pattern.permute.xlu0 0
    %73 = vperm.xlu0 %72, %v58
    %v74 = vpop.permute.xlu0 %73
    %77 = vset.pattern.permute.xlu0 0
    %78 = vperm.xlu0 %77, %v59
    %v79 = vpop.permute.xlu0 %78
    %82 = vset.pattern.permute.xlu0 0
    %83 = vperm.xlu0 %82, %v60
    %v84 = vpop.permute.xlu0 %83
    %87 = vset.pattern.permute.xlu0 0
    %88 = vperm.xlu0 %87, %v61
    %v89 = vpop.permute.xlu0 %88
    %92 = vset.pattern.permute.xlu0 0
    %93 = vperm.xlu0 %92, %v62
    %v94 = vpop.permute.xlu0 %93
    %97 = vset.pattern.permute.xlu0 0
    %98 = vperm.xlu0 %97, %v63
    %v99 = vpop.permute.xlu0 %98
    %102 = vset.pattern.permute.xlu0 0
    %103 = vperm.xlu0 %102, %v64
    %v104 = vpop.permute.xlu0 %103
    %v107 = vperm.slane %v65, 0
    %v108 = vperm.slane %v65, 1
    %v109 = vperm.slane %v65, 2
    %v110 = vperm.slane %v65, 3
    %v115 = vmul.f32 %v69, %v107
    %v116 = vmul.f32 %v69, %v108
    %v117 = vmul.f32 %v69, %v109
    %v118 = vmul.f32 %v69, %v110
    %v119 = vmul.f32 %v74, %v107
    %v120 = vmul.f32 %v74, %v108
    %v121 = vmul.f32 %v74, %v109
    %v122 = vmul.f32 %v74, %v110
    %v123 = vmul.f32 %v79, %v107
    %v124 = vmul.f32 %v79, %v108
    %v125 = vmul.f32 %v79, %v109
    %v126 = vmul.f32 %v79, %v110
    %v127 = vmul.f32 %v84, %v107
    %v128 = vmul.f32 %v84, %v108
    %v129 = vmul.f32 %v84, %v109
    %v130 = vmul.f32 %v84, %v110
    %v131 = vmul.f32 %v89, %v107
    %v132 = vmul.f32 %v89, %v108
    %v133 = vmul.f32 %v89, %v109
    %v134 = vmul.f32 %v89, %v110
    %v135 = vmul.f32 %v94, %v107
    %v136 = vmul.f32 %v94, %v108
    %v137 = vmul.f32 %v94, %v109
    %v138 = vmul.f32 %v94, %v110
    %v139 = vmul.f32 %v99, %v107
    %v140 = vmul.f32 %v99, %v108
    %v141 = vmul.f32 %v99, %v109
    %v142 = vmul.f32 %v99, %v110
    %v143 = vmul.f32 %v104, %v107
    %v144 = vmul.f32 %v104, %v108
    %v145 = vmul.f32 %v104, %v109
    %v146 = vmul.f32 %v104, %v110
    %s147 = scalar_lea.vmem %s1, 1
    %v148 = vld [vmem:[%s147] ss:$2 sm:$0xf]
    %149 = vset.pattern.permute.xlu0 1
    %150 = vperm.xlu0 %149, %v57
    %v151 = vpop.permute.xlu0 %150
    %153 = vset.pattern.permute.xlu0 1
    %154 = vperm.xlu0 %153, %v58
    %v155 = vpop.permute.xlu0 %154
    %157 = vset.pattern.permute.xlu0 1
    %158 = vperm.xlu0 %157, %v59
    %v159 = vpop.permute.xlu0 %158
    %161 = vset.pattern.permute.xlu0 1
    %162 = vperm.xlu0 %161, %v60
    %v163 = vpop.permute.xlu0 %162
    %165 = vset.pattern.permute.xlu0 1
    %166 = vperm.xlu0 %165, %v61
    %v167 = vpop.permute.xlu0 %166
    %169 = vset.pattern.permute.xlu0 1
    %170 = vperm.xlu0 %169, %v62
    %v171 = vpop.permute.xlu0 %170
    %173 = vset.pattern.permute.xlu0 1
    %174 = vperm.xlu0 %173, %v63
    %v175 = vpop.permute.xlu0 %174
    %177 = vset.pattern.permute.xlu0 1
    %178 = vperm.xlu0 %177, %v64
    %v179 = vpop.permute.xlu0 %178
    %v182 = vperm.slane %v148, 0
    %v183 = vperm.slane %v148, 1
    %v184 = vperm.slane %v148, 2
    %v185 = vperm.slane %v148, 3
    %v190 = vmul.f32 %v151, %v182
    %v191 = vmul.f32 %v151, %v183
    %v192 = vmul.f32 %v151, %v184
    %v193 = vmul.f32 %v151, %v185
    %v194 = vmul.f32 %v155, %v182
    %v195 = vmul.f32 %v155, %v183
    %v196 = vmul.f32 %v155, %v184
    %v197 = vmul.f32 %v155, %v185
    %v198 = vmul.f32 %v159, %v182
    %v199 = vmul.f32 %v159, %v183
    %v200 = vmul.f32 %v159, %v184
    %v201 = vmul.f32 %v159, %v185
    %v202 = vmul.f32 %v163, %v182
    %v203 = vmul.f32 %v163, %v183
    %v204 = vmul.f32 %v163, %v184
    %v205 = vmul.f32 %v163, %v185
    %v206 = vmul.f32 %v167, %v182
    %v207 = vmul.f32 %v167, %v183
    %v208 = vmul.f32 %v167, %v184
    %v209 = vmul.f32 %v167, %v185
    %v210 = vmul.f32 %v171, %v182
    %v211 = vmul.f32 %v171, %v183
    %v212 = vmul.f32 %v171, %v184
    %v213 = vmul.f32 %v171, %v185
    %v214 = vmul.f32 %v175, %v182
    %v215 = vmul.f32 %v175, %v183
    %v216 = vmul.f32 %v175, %v184
    %v217 = vmul.f32 %v175, %v185
    %v218 = vmul.f32 %v179, %v182
    %v219 = vmul.f32 %v179, %v183
    %v220 = vmul.f32 %v179, %v184
    %v221 = vmul.f32 %v179, %v185
    %v222 = vadd.f32 %v115, %v190
    %v223 = vadd.f32 %v116, %v191
    %v224 = vadd.f32 %v117, %v192
    %v225 = vadd.f32 %v118, %v193
    %v226 = vadd.f32 %v119, %v194
    %v227 = vadd.f32 %v120, %v195
    %v228 = vadd.f32 %v121, %v196
    %v229 = vadd.f32 %v122, %v197
    %v230 = vadd.f32 %v123, %v198
    %v231 = vadd.f32 %v124, %v199
    %v232 = vadd.f32 %v125, %v200
    %v233 = vadd.f32 %v126, %v201
    %v234 = vadd.f32 %v127, %v202
    %v235 = vadd.f32 %v128, %v203
    %v236 = vadd.f32 %v129, %v204
    %v237 = vadd.f32 %v130, %v205
    %v238 = vadd.f32 %v131, %v206
    %v239 = vadd.f32 %v132, %v207
    %v240 = vadd.f32 %v133, %v208
    %v241 = vadd.f32 %v134, %v209
    %v242 = vadd.f32 %v135, %v210
    %v243 = vadd.f32 %v136, %v211
    %v244 = vadd.f32 %v137, %v212
    %v245 = vadd.f32 %v138, %v213
    %v246 = vadd.f32 %v139, %v214
    %v247 = vadd.f32 %v140, %v215
    %v248 = vadd.f32 %v141, %v216
    %v249 = vadd.f32 %v142, %v217
    %v250 = vadd.f32 %v143, %v218
    %v251 = vadd.f32 %v144, %v219
    %v252 = vadd.f32 %v145, %v220
    %v253 = vadd.f32 %v146, %v221
    %v254 = vld [vmem:[%s3] sm:$0xf]
    %v256 = vperm.slane %v254, 0
    %v257 = vperm.slane %v254, 1
    %v258 = vperm.slane %v254, 2
    %v259 = vperm.slane %v254, 3
    %v264 = vadd.f32 %v222, %v256
    %v265 = vadd.f32 %v223, %v257
    %v266 = vadd.f32 %v224, %v258
    %v267 = vadd.f32 %v225, %v259
    %v268 = vadd.f32 %v226, %v256
    %v269 = vadd.f32 %v227, %v257
    %v270 = vadd.f32 %v228, %v258
    %v271 = vadd.f32 %v229, %v259
    %v272 = vadd.f32 %v230, %v256
    %v273 = vadd.f32 %v231, %v257
    %v274 = vadd.f32 %v232, %v258
    %v275 = vadd.f32 %v233, %v259
    %v276 = vadd.f32 %v234, %v256
    %v277 = vadd.f32 %v235, %v257
    %v278 = vadd.f32 %v236, %v258
    %v279 = vadd.f32 %v237, %v259
    %v280 = vadd.f32 %v238, %v256
    %v281 = vadd.f32 %v239, %v257
    %v282 = vadd.f32 %v240, %v258
    %v283 = vadd.f32 %v241, %v259
    %v284 = vadd.f32 %v242, %v256
    %v285 = vadd.f32 %v243, %v257
    %v286 = vadd.f32 %v244, %v258
    %v287 = vadd.f32 %v245, %v259
    %v288 = vadd.f32 %v246, %v256
    %v289 = vadd.f32 %v247, %v257
    %v290 = vadd.f32 %v248, %v258
    %v291 = vadd.f32 %v249, %v259
    %v292 = vadd.f32 %v250, %v256
    %v293 = vadd.f32 %v251, %v257
    %v294 = vadd.f32 %v252, %v258
    %v295 = vadd.f32 %v253, %v259
    %296 = vst [vmem:[#allocation2] sm:$0xff] %v264
    %297 = vst [vmem:[#allocation2 + $0x8] sm:$0xff] %v265
    %298 = vst [vmem:[#allocation2 + $0x10] sm:$0xff] %v266
    %299 = vst [vmem:[#allocation2 + $0x18] sm:$0xff] %v267
    %300 = vst [vmem:[#allocation2 + $0x20] sm:$0xff] %v268
    %301 = vst [vmem:[#allocation2 + $0x28] sm:$0xff] %v269
    %302 = vst [vmem:[#allocation2 + $0x30] sm:$0xff] %v270
    %303 = vst [vmem:[#allocation2 + $0x38] sm:$0xff] %v271
    %304 = vst [vmem:[#allocation2 + $0x40] sm:$0xff] %v272
    %305 = vst [vmem:[#allocation2 + $0x48] sm:$0xff] %v273
    %306 = vst [vmem:[#allocation2 + $0x50] sm:$0xff] %v274
    %307 = vst [vmem:[#allocation2 + $0x58] sm:$0xff] %v275
    %308 = vst [vmem:[#allocation2 + $0x60] sm:$0xff] %v276
    %309 = vst [vmem:[#allocation2 + $0x68] sm:$0xff] %v277
    %310 = vst [vmem:[#allocation2 + $0x70] sm:$0xff] %v278
    %311 = vst [vmem:[#allocation2 + $0x78] sm:$0xff] %v279
    %312 = vst [vmem:[#allocation2 + $0x80] sm:$0xff] %v280
    %313 = vst [vmem:[#allocation2 + $0x88] sm:$0xff] %v281
    %314 = vst [vmem:[#allocation2 + $0x90] sm:$0xff] %v282
    %315 = vst [vmem:[#allocation2 + $0x98] sm:$0xff] %v283
    %316 = vst [vmem:[#allocation2 + $0xa0] sm:$0xff] %v284
    %317 = vst [vmem:[#allocation2 + $0xa8] sm:$0xff] %v285
    %318 = vst [vmem:[#allocation2 + $0xb0] sm:$0xff] %v286
    %319 = vst [vmem:[#allocation2 + $0xb8] sm:$0xff] %v287
    %320 = vst [vmem:[#allocation2 + $0xc0] sm:$0xff] %v288
    %321 = vst [vmem:[#allocation2 + $0xc8] sm:$0xff] %v289
    %322 = vst [vmem:[#allocation2 + $0xd0] sm:$0xff] %v290
    %323 = vst [vmem:[#allocation2 + $0xd8] sm:$0xff] %v291
    %324 = vst [vmem:[#allocation2 + $0xe0] sm:$0xff] %v292
    %325 = vst [vmem:[#allocation2 + $0xe8] sm:$0xff] %v293
    %326 = vst [vmem:[#allocation2 + $0xf0] sm:$0xff] %v294
    %327 = vst [vmem:[#allocation2 + $0xf8] sm:$0xff] %v295
    %v328 = vld [vmem:[#allocation2] sm:$0xff]
    %v329 = vld [vmem:[#allocation2 + $0x8] sm:$0xff]
    %v330 = vld [vmem:[#allocation2 + $0x10] sm:$0xff]
    %v331 = vld [vmem:[#allocation2 + $0x18] sm:$0xff]
    %v332 = vld [vmem:[#allocation3] sm:$0xff]
    %v333 = vld [vmem:[#allocation3 + $0x8] sm:$0xff]
    %v334 = vld [vmem:[#allocation3 + $0x10] sm:$0xff]
    %v335 = vld [vmem:[#allocation3 + $0x18] sm:$0xff]
    %v336 = vld [vmem:[#allocation3 + $0x20] sm:$0xff]
    %v337 = vld [vmem:[#allocation3 + $0x28] sm:$0xff]
    %v338 = vld [vmem:[#allocation3 + $0x30] sm:$0xff]
    %v339 = vld [vmem:[#allocation3 + $0x38] sm:$0xff]
    %v340 = vld [vmem:[#allocation3 + $0x40] sm:$0xff]
    %v341 = vld [vmem:[#allocation3 + $0x48] sm:$0xff]
    %v342 = vld [vmem:[#allocation3 + $0x50] sm:$0xff]
    %v343 = vld [vmem:[#allocation3 + $0x58] sm:$0xff]
    %v344 = vld [vmem:[#allocation3 + $0x60] sm:$0xff]
    %v345 = vld [vmem:[#allocation3 + $0x68] sm:$0xff]
    %v346 = vld [vmem:[#allocation3 + $0x70] sm:$0xff]
    %v347 = vld [vmem:[#allocation3 + $0x78] sm:$0xff]
    %v348 = vld [vmem:[#allocation3 + $0x80] sm:$0xff]
    %v349 = vld [vmem:[#allocation3 + $0x88] sm:$0xff]
    %v350 = vld [vmem:[#allocation3 + $0x90] sm:$0xff]
    %v351 = vld [vmem:[#allocation3 + $0x98] sm:$0xff]
    %v352 = vld [vmem:[#allocation3 + $0xa0] sm:$0xff]
    %v353 = vld [vmem:[#allocation3 + $0xa8] sm:$0xff]
    %v354 = vld [vmem:[#allocation3 + $0xb0] sm:$0xff]
    %v355 = vld [vmem:[#allocation3 + $0xb8] sm:$0xff]
    %v356 = vld [vmem:[#allocation3 + $0xc0] sm:$0xff]
    %v357 = vld [vmem:[#allocation3 + $0xc8] sm:$0xff]
    %v358 = vld [vmem:[#allocation3 + $0xd0] sm:$0xff]
    %v359 = vld [vmem:[#allocation3 + $0xd8] sm:$0xff]
    %v360 = vld [vmem:[#allocation3 + $0xe0] sm:$0xff]
    %v361 = vld [vmem:[#allocation3 + $0xe8] sm:$0xff]
    %v362 = vld [vmem:[#allocation3 + $0xf0] sm:$0xff]
    %v363 = vld [vmem:[#allocation3 + $0xf8] sm:$0xff]
    %v396 = vunpack.c.l.b16 %v332
    %v397 = vunpack.c.h.b16 %v332
    %v398 = vunpack.c.l.b16 %v333
    %v399 = vunpack.c.h.b16 %v333
    %v400 = vunpack.c.l.b16 %v334
    %v401 = vunpack.c.h.b16 %v334
    %v402 = vunpack.c.l.b16 %v335
    %v403 = vunpack.c.h.b16 %v335
    %v404 = vunpack.c.l.b16 %v336
    %v405 = vunpack.c.h.b16 %v336
    %v406 = vunpack.c.l.b16 %v337
    %v407 = vunpack.c.h.b16 %v337
    %v408 = vunpack.c.l.b16 %v338
    %v409 = vunpack.c.h.b16 %v338
    %v410 = vunpack.c.l.b16 %v339
    %v411 = vunpack.c.h.b16 %v339
    %v412 = vunpack.c.l.b16 %v340
    %v413 = vunpack.c.h.b16 %v340
    %v414 = vunpack.c.l.b16 %v341
    %v415 = vunpack.c.h.b16 %v341
    %v416 = vunpack.c.l.b16 %v342
    %v417 = vunpack.c.h.b16 %v342
    %v418 = vunpack.c.l.b16 %v343
    %v419 = vunpack.c.h.b16 %v343
    %v420 = vunpack.c.l.b16 %v344
    %v421 = vunpack.c.h.b16 %v344
    %v422 = vunpack.c.l.b16 %v345
    %v423 = vunpack.c.h.b16 %v345
    %v424 = vunpack.c.l.b16 %v346
    %v425 = vunpack.c.h.b16 %v346
    %v426 = vunpack.c.l.b16 %v347
    %v427 = vunpack.c.h.b16 %v347
    %v428 = vunpack.c.l.b16 %v348
    %v429 = vunpack.c.h.b16 %v348
    %v430 = vunpack.c.l.b16 %v349
    %v431 = vunpack.c.h.b16 %v349
    %v432 = vunpack.c.l.b16 %v350
    %v433 = vunpack.c.h.b16 %v350
    %v434 = vunpack.c.l.b16 %v351
    %v435 = vunpack.c.h.b16 %v351
    %v436 = vunpack.c.l.b16 %v352
    %v437 = vunpack.c.h.b16 %v352
    %v438 = vunpack.c.l.b16 %v353
    %v439 = vunpack.c.h.b16 %v353
    %v440 = vunpack.c.l.b16 %v354
    %v441 = vunpack.c.h.b16 %v354
    %v442 = vunpack.c.l.b16 %v355
    %v443 = vunpack.c.h.b16 %v355
    %v444 = vunpack.c.l.b16 %v356
    %v445 = vunpack.c.h.b16 %v356
    %v446 = vunpack.c.l.b16 %v357
    %v447 = vunpack.c.h.b16 %v357
    %v448 = vunpack.c.l.b16 %v358
    %v449 = vunpack.c.h.b16 %v358
    %v450 = vunpack.c.l.b16 %v359
    %v451 = vunpack.c.h.b16 %v359
    %v452 = vunpack.c.l.b16 %v360
    %v453 = vunpack.c.h.b16 %v360
    %v454 = vunpack.c.l.b16 %v361
    %v455 = vunpack.c.h.b16 %v361
    %v456 = vunpack.c.l.b16 %v362
    %v457 = vunpack.c.h.b16 %v362
    %v458 = vunpack.c.l.b16 %v363
    %v459 = vunpack.c.h.b16 %v363
    %v460 = vpack.c.b16 %v400, %v396
    %v461 = vpack.c.b16 %v401, %v397
    %v462 = vpack.c.b16 %v402, %v398
    %v463 = vpack.c.b16 %v403, %v399
    %v464 = vpack.c.b16 %v408, %v404
    %v465 = vpack.c.b16 %v409, %v405
    %v466 = vpack.c.b16 %v410, %v406
    %v467 = vpack.c.b16 %v411, %v407
    %v468 = vpack.c.b16 %v416, %v412
    %v469 = vpack.c.b16 %v417, %v413
    %v470 = vpack.c.b16 %v418, %v414
    %v471 = vpack.c.b16 %v419, %v415
    %v472 = vpack.c.b16 %v424, %v420
    %v473 = vpack.c.b16 %v425, %v421
    %v474 = vpack.c.b16 %v426, %v422
    %v475 = vpack.c.b16 %v427, %v423
    %v476 = vpack.c.b16 %v432, %v428
    %v477 = vpack.c.b16 %v433, %v429
    %v478 = vpack.c.b16 %v434, %v430
    %v479 = vpack.c.b16 %v435, %v431
    %v480 = vpack.c.b16 %v440, %v436
    %v481 = vpack.c.b16 %v441, %v437
    %v482 = vpack.c.b16 %v442, %v438
    %v483 = vpack.c.b16 %v443, %v439
    %v484 = vpack.c.b16 %v448, %v444
    %v485 = vpack.c.b16 %v449, %v445
    %v486 = vpack.c.b16 %v450, %v446
    %v487 = vpack.c.b16 %v451, %v447
    %v488 = vpack.c.b16 %v456, %v452
    %v489 = vpack.c.b16 %v457, %v453
    %v490 = vpack.c.b16 %v458, %v454
    %v491 = vpack.c.b16 %v459, %v455
    %524 = vmatpush.bf16.msra.mxu0 %v488
    %525 = vmatpush.bf16.msra.mxu0 %v484
    %526 = vmatpush.bf16.msra.mxu0 %v480
    %527 = vmatpush.bf16.msra.mxu0 %v476
    %528 = vmatpush.bf16.msra.mxu0 %v472
    %529 = vmatpush.bf16.msra.mxu0 %v468
    %530 = vmatpush.bf16.msra.mxu0 %v464
    %531 = vmatpush.bf16.msra.mxu0 %v460
    %532 = vmatmul.bf16.gmra.mxu0 0
    %v533 = vpop.f32.mrf.mxu0
    %v534 = vadd.f32 0.0, %v533
    %v535 = vpop.f32.mrf.mxu0
    %536 = vdwg.mxu0
    %537 = vmatpush.bf16.msra.mxu0 %v489
    %538 = vmatpush.bf16.msra.mxu0 %v485
    %539 = vmatpush.bf16.msra.mxu0 %v481
    %540 = vmatpush.bf16.msra.mxu0 %v477
    %541 = vmatpush.bf16.msra.mxu0 %v473
    %542 = vmatpush.bf16.msra.mxu0 %v469
    %543 = vmatpush.bf16.msra.mxu0 %v465
    %544 = vmatpush.bf16.msra.mxu0 %v461
    %545 = vmatmul.bf16.gmra.mxu0 0
    %v546 = vpop.f32.mrf.mxu0
    %v547 = vadd.f32 0.0, %v546
    %v548 = vpop.f32.mrf.mxu0
    %549 = vdwg.mxu0
    %550 = vmatpush.bf16.msra.mxu0 %v490
    %551 = vmatpush.bf16.msra.mxu0 %v486
    %552 = vmatpush.bf16.msra.mxu0 %v482
    %553 = vmatpush.bf16.msra.mxu0 %v478
    %554 = vmatpush.bf16.msra.mxu0 %v474
    %555 = vmatpush.bf16.msra.mxu0 %v470
    %556 = vmatpush.bf16.msra.mxu0 %v466
    %557 = vmatpush.bf16.msra.mxu0 %v462
    %558 = vmatmul.bf16.gmra.mxu0 0
    %v559 = vpop.f32.mrf.mxu0
    %v560 = vadd.f32 0.0, %v559
    %v561 = vpop.f32.mrf.mxu0
    %562 = vdwg.mxu0
    %563 = vmatpush.bf16.msra.mxu0 %v491
    %564 = vmatpush.bf16.msra.mxu0 %v487
    %565 = vmatpush.bf16.msra.mxu0 %v483
    %566 = vmatpush.bf16.msra.mxu0 %v479
    %567 = vmatpush.bf16.msra.mxu0 %v475
    %568 = vmatpush.bf16.msra.mxu0 %v471
    %569 = vmatpush.bf16.msra.mxu0 %v467
    %570 = vmatpush.bf16.msra.mxu0 %v463
    %571 = vmatmul.bf16.gmra.mxu0 0
    %v572 = vpop.f32.mrf.mxu0
    %v573 = vadd.f32 0.0, %v572
    %v574 = vpop.f32.mrf.mxu0
    %575 = vdwg.mxu0
    %v576 = vadd.f32 %v328, %v534
    %v577 = vadd.f32 %v329, %v547
    %v578 = vadd.f32 %v330, %v560
    %v579 = vadd.f32 %v331, %v573
    %v580 = vtanh.pop %v576
    %v581 = vmul.f32 %v580, 0.5
    %v582 = vadd.f32 %v581, 0.5
    %v583 = vtanh.pop %v577
    %v584 = vmul.f32 %v583, 0.5
    %v585 = vadd.f32 %v584, 0.5
    %v586 = vtanh.pop %v578
    %v587 = vtanh.pop %v579
    %v588 = vmul.f32 %v587, 0.5
    %v589 = vadd.f32 %v588, 0.5
    %v590 = vmul.f32 %v585, 0.0
    %v591 = vmul.f32 %v582, %v586
    %v592 = vadd.f32 %v590, %v591
    %v593 = vtanh.pop %v592
    %v594 = vmul.f32 %v589, %v593
    %v595 = vld [vmem:[#allocation2 + $0x20] sm:$0xff]
    %v596 = vld [vmem:[#allocation2 + $0x28] sm:$0xff]
    %v597 = vld [vmem:[#allocation2 + $0x30] sm:$0xff]
    %v598 = vld [vmem:[#allocation2 + $0x38] sm:$0xff]
    %v599 = vpack.c.bf16 %v594, %v594
    %600 = vmatpush.bf16.msra.mxu0 %v488
    %601 = vmatpush.bf16.msra.mxu0 %v484
    %602 = vmatpush.bf16.msra.mxu0 %v480
    %603 = vmatpush.bf16.msra.mxu0 %v476
    %604 = vmatpush.bf16.msra.mxu0 %v472
    %605 = vmatpush.bf16.msra.mxu0 %v468
    %606 = vmatpush.bf16.msra.mxu0 %v464
    %607 = vmatpush.bf16.msra.mxu0 %v460
    %608 = vmatmul.bf16.gmra.mxu0 %v599
    %v609 = vpop.f32.mrf.mxu0
    %v610 = vadd.f32 0.0, %v609
    %v611 = vpop.f32.mrf.mxu0
    %612 = vdwg.mxu0
    %613 = vmatpush.bf16.msra.mxu0 %v489
    %614 = vmatpush.bf16.msra.mxu0 %v485
    %615 = vmatpush.bf16.msra.mxu0 %v481
    %616 = vmatpush.bf16.msra.mxu0 %v477
    %617 = vmatpush.bf16.msra.mxu0 %v473
    %618 = vmatpush.bf16.msra.mxu0 %v469
    %619 = vmatpush.bf16.msra.mxu0 %v465
    %620 = vmatpush.bf16.msra.mxu0 %v461
    %621 = vmatmul.bf16.gmra.mxu0 %v599
    %v622 = vpop.f32.mrf.mxu0
    %v623 = vadd.f32 0.0, %v622
    %v624 = vpop.f32.mrf.mxu0
    %625 = vdwg.mxu0
    %626 = vmatpush.bf16.msra.mxu0 %v490
    %627 = vmatpush.bf16.msra.mxu0 %v486
    %628 = vmatpush.bf16.msra.mxu0 %v482
    %629 = vmatpush.bf16.msra.mxu0 %v478
    %630 = vmatpush.bf16.msra.mxu0 %v474
    %631 = vmatpush.bf16.msra.mxu0 %v470
    %632 = vmatpush.bf16.msra.mxu0 %v466
    %633 = vmatpush.bf16.msra.mxu0 %v462
    %634 = vmatmul.bf16.gmra.mxu0 %v599
    %v635 = vpop.f32.mrf.mxu0
    %v636 = vadd.f32 0.0, %v635
    %v637 = vpop.f32.mrf.mxu0
    %638 = vdwg.mxu0
    %639 = vmatpush.bf16.msra.mxu0 %v491
    %640 = vmatpush.bf16.msra.mxu0 %v487
    %641 = vmatpush.bf16.msra.mxu0 %v483
    %642 = vmatpush.bf16.msra.mxu0 %v479
    %643 = vmatpush.bf16.msra.mxu0 %v475
    %644 = vmatpush.bf16.msra.mxu0 %v471
    %645 = vmatpush.bf16.msra.mxu0 %v467
    %646 = vmatpush.bf16.msra.mxu0 %v463
    %647 = vmatmul.bf16.gmra.mxu0 %v599
    %v648 = vpop.f32.mrf.mxu0
    %v649 = vadd.f32 0.0, %v648
    %v650 = vpop.f32.mrf.mxu0
    %651 = vdwg.mxu0
    %v652 = vadd.f32 %v595, %v610
    %v653 = vadd.f32 %v596, %v623
    %v654 = vadd.f32 %v597, %v636
    %v655 = vadd.f32 %v598, %v649
    %v656 = vtanh.pop %v652
    %v657 = vmul.f32 %v656, 0.5
    %v658 = vadd.f32 %v657, 0.5
    %v659 = vtanh.pop %v653
    %v660 = vmul.f32 %v659, 0.5
    %v661 = vadd.f32 %v660, 0.5
    %v662 = vtanh.pop %v654
    %v663 = vtanh.pop %v655
    %v664 = vmul.f32 %v663, 0.5
    %v665 = vadd.f32 %v664, 0.5
    %v666 = vmul.f32 %v661, %v592
    %v667 = vmul.f32 %v658, %v662
    %v668 = vadd.f32 %v666, %v667
    %v669 = vtanh.pop %v668
    %v670 = vmul.f32 %v665, %v669
    %v671 = vld [vmem:[#allocation2 + $0x40] sm:$0xff]
    %v672 = vld [vmem:[#allocation2 + $0x48] sm:$0xff]
    %v673 = vld [vmem:[#allocation2 + $0x50] sm:$0xff]
    %v674 = vld [vmem:[#allocation2 + $0x58] sm:$0xff]
    %v675 = vpack.c.bf16 %v670, %v670
    %676 = vmatpush.bf16.msra.mxu0 %v488
    %677 = vmatpush.bf16.msra.mxu0 %v484
    %678 = vmatpush.bf16.msra.mxu0 %v480
    %679 = vmatpush.bf16.msra.mxu0 %v476
    %680 = vmatpush.bf16.msra.mxu0 %v472
    %681 = vmatpush.bf16.msra.mxu0 %v468
    %682 = vmatpush.bf16.msra.mxu0 %v464
    %683 = vmatpush.bf16.msra.mxu0 %v460
    %684 = vmatmul.bf16.gmra.mxu0 %v675
    %v685 = vpop.f32.mrf.mxu0
    %v686 = vadd.f32 0.0, %v685
    %v687 = vpop.f32.mrf.mxu0
    %688 = vdwg.mxu0
    %689 = vmatpush.bf16.msra.mxu0 %v489
    %690 = vmatpush.bf16.msra.mxu0 %v485
    %691 = vmatpush.bf16.msra.mxu0 %v481
    %692 = vmatpush.bf16.msra.mxu0 %v477
    %693 = vmatpush.bf16.msra.mxu0 %v473
    %694 = vmatpush.bf16.msra.mxu0 %v469
    %695 = vmatpush.bf16.msra.mxu0 %v465
    %696 = vmatpush.bf16.msra.mxu0 %v461
    %697 = vmatmul.bf16.gmra.mxu0 %v675
    %v698 = vpop.f32.mrf.mxu0
    %v699 = vadd.f32 0.0, %v698
    %v700 = vpop.f32.mrf.mxu0
    %701 = vdwg.mxu0
    %702 = vmatpush.bf16.msra.mxu0 %v490
    %703 = vmatpush.bf16.msra.mxu0 %v486
    %704 = vmatpush.bf16.msra.mxu0 %v482
    %705 = vmatpush.bf16.msra.mxu0 %v478
    %706 = vmatpush.bf16.msra.mxu0 %v474
    %707 = vmatpush.bf16.msra.mxu0 %v470
    %708 = vmatpush.bf16.msra.mxu0 %v466
    %709 = vmatpush.bf16.msra.mxu0 %v462
    %710 = vmatmul.bf16.gmra.mxu0 %v675
    %v711 = vpop.f32.mrf.mxu0
    %v712 = vadd.f32 0.0, %v711
    %v713 = vpop.f32.mrf.mxu0
    %714 = vdwg.mxu0
    %715 = vmatpush.bf16.msra.mxu0 %v491
    %716 = vmatpush.bf16.msra.mxu0 %v487
    %717 = vmatpush.bf16.msra.mxu0 %v483
    %718 = vmatpush.bf16.msra.mxu0 %v479
    %719 = vmatpush.bf16.msra.mxu0 %v475
    %720 = vmatpush.bf16.msra.mxu0 %v471
    %721 = vmatpush.bf16.msra.mxu0 %v467
    %722 = vmatpush.bf16.msra.mxu0 %v463
    %723 = vmatmul.bf16.gmra.mxu0 %v675
    %v724 = vpop.f32.mrf.mxu0
    %v725 = vadd.f32 0.0, %v724
    %v726 = vpop.f32.mrf.mxu0
    %727 = vdwg.mxu0
    %v728 = vadd.f32 %v671, %v686
    %v729 = vadd.f32 %v672, %v699
    %v730 = vadd.f32 %v673, %v712
    %v731 = vadd.f32 %v674, %v725
    %v732 = vtanh.pop %v728
    %v733 = vmul.f32 %v732, 0.5
    %v734 = vadd.f32 %v733, 0.5
    %v735 = vtanh.pop %v729
    %v736 = vmul.f32 %v735, 0.5
    %v737 = vadd.f32 %v736, 0.5
    %v738 = vtanh.pop %v730
    %v739 = vtanh.pop %v731
    %v740 = vmul.f32 %v739, 0.5
    %v741 = vadd.f32 %v740, 0.5
    %v742 = vmul.f32 %v737, %v668
    %v743 = vmul.f32 %v734, %v738
    %v744 = vadd.f32 %v742, %v743
    %v745 = vtanh.pop %v744
    %v746 = vmul.f32 %v741, %v745
    %v747 = vld [vmem:[#allocation2 + $0x60] sm:$0xff]
    %v748 = vld [vmem:[#allocation2 + $0x68] sm:$0xff]
    %v749 = vld [vmem:[#allocation2 + $0x70] sm:$0xff]
    %v750 = vld [vmem:[#allocation2 + $0x78] sm:$0xff]
    %v751 = vpack.c.bf16 %v746, %v746
    %752 = vmatpush.bf16.msra.mxu0 %v488
    %753 = vmatpush.bf16.msra.mxu0 %v484
    %754 = vmatpush.bf16.msra.mxu0 %v480
    %755 = vmatpush.bf16.msra.mxu0 %v476
    %756 = vmatpush.bf16.msra.mxu0 %v472
    %757 = vmatpush.bf16.msra.mxu0 %v468
    %758 = vmatpush.bf16.msra.mxu0 %v464
    %759 = vmatpush.bf16.msra.mxu0 %v460
    %760 = vmatmul.bf16.gmra.mxu0 %v751
    %v761 = vpop.f32.mrf.mxu0
    %v762 = vadd.f32 0.0, %v761
    %v763 = vpop.f32.mrf.mxu0
    %764 = vdwg.mxu0
    %765 = vmatpush.bf16.msra.mxu0 %v489
    %766 = vmatpush.bf16.msra.mxu0 %v485
    %767 = vmatpush.bf16.msra.mxu0 %v481
    %768 = vmatpush.bf16.msra.mxu0 %v477
    %769 = vmatpush.bf16.msra.mxu0 %v473
    %770 = vmatpush.bf16.msra.mxu0 %v469
    %771 = vmatpush.bf16.msra.mxu0 %v465
    %772 = vmatpush.bf16.msra.mxu0 %v461
    %773 = vmatmul.bf16.gmra.mxu0 %v751
    %v774 = vpop.f32.mrf.mxu0
    %v775 = vadd.f32 0.0, %v774
    %v776 = vpop.f32.mrf.mxu0
    %777 = vdwg.mxu0
    %778 = vmatpush.bf16.msra.mxu0 %v490
    %779 = vmatpush.bf16.msra.mxu0 %v486
    %780 = vmatpush.bf16.msra.mxu0 %v482
    %781 = vmatpush.bf16.msra.mxu0 %v478
    %782 = vmatpush.bf16.msra.mxu0 %v474
    %783 = vmatpush.bf16.msra.mxu0 %v470
    %784 = vmatpush.bf16.msra.mxu0 %v466
    %785 = vmatpush.bf16.msra.mxu0 %v462
    %786 = vmatmul.bf16.gmra.mxu0 %v751
    %v787 = vpop.f32.mrf.mxu0
    %v788 = vadd.f32 0.0, %v787
    %v789 = vpop.f32.mrf.mxu0
    %790 = vdwg.mxu0
    %791 = vmatpush.bf16.msra.mxu0 %v491
    %792 = vmatpush.bf16.msra.mxu0 %v487
    %793 = vmatpush.bf16.msra.mxu0 %v483
    %794 = vmatpush.bf16.msra.mxu0 %v479
    %795 = vmatpush.bf16.msra.mxu0 %v475
    %796 = vmatpush.bf16.msra.mxu0 %v471
    %797 = vmatpush.bf16.msra.mxu0 %v467
    %798 = vmatpush.bf16.msra.mxu0 %v463
    %799 = vmatmul.bf16.gmra.mxu0 %v751
    %v800 = vpop.f32.mrf.mxu0
    %v801 = vadd.f32 0.0, %v800
    %v802 = vpop.f32.mrf.mxu0
    %803 = vdwg.mxu0
    %v804 = vadd.f32 %v747, %v762
    %v805 = vadd.f32 %v748, %v775
    %v806 = vadd.f32 %v749, %v788
    %v807 = vadd.f32 %v750, %v801
    %v808 = vtanh.pop %v804
    %v809 = vmul.f32 %v808, 0.5
    %v810 = vadd.f32 %v809, 0.5
    %v811 = vtanh.pop %v805
    %v812 = vmul.f32 %v811, 0.5
    %v813 = vadd.f32 %v812, 0.5
    %v814 = vtanh.pop %v806
    %v815 = vtanh.pop %v807
    %v816 = vmul.f32 %v815, 0.5
    %v817 = vadd.f32 %v816, 0.5
    %v818 = vmul.f32 %v813, %v744
    %v819 = vmul.f32 %v810, %v814
    %v820 = vadd.f32 %v818, %v819
    %v821 = vtanh.pop %v820
    %v822 = vmul.f32 %v817, %v821
    %v823 = vld [vmem:[#allocation2 + $0x80] sm:$0xff]
    %v824 = vld [vmem:[#allocation2 + $0x88] sm:$0xff]
    %v825 = vld [vmem:[#allocation2 + $0x90] sm:$0xff]
    %v826 = vld [vmem:[#allocation2 + $0x98] sm:$0xff]
    %v827 = vpack.c.bf16 %v822, %v822
    %828 = vmatpush.bf16.msra.mxu0 %v488
    %829 = vmatpush.bf16.msra.mxu0 %v484
    %830 = vmatpush.bf16.msra.mxu0 %v480
    %831 = vmatpush.bf16.msra.mxu0 %v476
    %832 = vmatpush.bf16.msra.mxu0 %v472
    %833 = vmatpush.bf16.msra.mxu0 %v468
    %834 = vmatpush.bf16.msra.mxu0 %v464
    %835 = vmatpush.bf16.msra.mxu0 %v460
    %836 = vmatmul.bf16.gmra.mxu0 %v827
    %v837 = vpop.f32.mrf.mxu0
    %v838 = vadd.f32 0.0, %v837
    %v839 = vpop.f32.mrf.mxu0
    %840 = vdwg.mxu0
    %841 = vmatpush.bf16.msra.mxu0 %v489
    %842 = vmatpush.bf16.msra.mxu0 %v485
    %843 = vmatpush.bf16.msra.mxu0 %v481
    %844 = vmatpush.bf16.msra.mxu0 %v477
    %845 = vmatpush.bf16.msra.mxu0 %v473
    %846 = vmatpush.bf16.msra.mxu0 %v469
    %847 = vmatpush.bf16.msra.mxu0 %v465
    %848 = vmatpush.bf16.msra.mxu0 %v461
    %849 = vmatmul.bf16.gmra.mxu0 %v827
    %v850 = vpop.f32.mrf.mxu0
    %v851 = vadd.f32 0.0, %v850
    %v852 = vpop.f32.mrf.mxu0
    %853 = vdwg.mxu0
    %854 = vmatpush.bf16.msra.mxu0 %v490
    %855 = vmatpush.bf16.msra.mxu0 %v486
    %856 = vmatpush.bf16.msra.mxu0 %v482
    %857 = vmatpush.bf16.msra.mxu0 %v478
    %858 = vmatpush.bf16.msra.mxu0 %v474
    %859 = vmatpush.bf16.msra.mxu0 %v470
    %860 = vmatpush.bf16.msra.mxu0 %v466
    %861 = vmatpush.bf16.msra.mxu0 %v462
    %862 = vmatmul.bf16.gmra.mxu0 %v827
    %v863 = vpop.f32.mrf.mxu0
    %v864 = vadd.f32 0.0, %v863
    %v865 = vpop.f32.mrf.mxu0
    %866 = vdwg.mxu0
    %867 = vmatpush.bf16.msra.mxu0 %v491
    %868 = vmatpush.bf16.msra.mxu0 %v487
    %869 = vmatpush.bf16.msra.mxu0 %v483
    %870 = vmatpush.bf16.msra.mxu0 %v479
    %871 = vmatpush.bf16.msra.mxu0 %v475
    %872 = vmatpush.bf16.msra.mxu0 %v471
    %873 = vmatpush.bf16.msra.mxu0 %v467
    %874 = vmatpush.bf16.msra.mxu0 %v463
    %875 = vmatmul.bf16.gmra.mxu0 %v827
    %v876 = vpop.f32.mrf.mxu0
    %v877 = vadd.f32 0.0, %v876
    %v878 = vpop.f32.mrf.mxu0
    %879 = vdwg.mxu0
    %v880 = vadd.f32 %v823, %v838
    %v881 = vadd.f32 %v824, %v851
    %v882 = vadd.f32 %v825, %v864
    %v883 = vadd.f32 %v826, %v877
    %v884 = vtanh.pop %v880
    %v885 = vmul.f32 %v884, 0.5
    %v886 = vadd.f32 %v885, 0.5
    %v887 = vtanh.pop %v881
    %v888 = vmul.f32 %v887, 0.5
    %v889 = vadd.f32 %v888, 0.5
    %v890 = vtanh.pop %v882
    %v891 = vtanh.pop %v883
    %v892 = vmul.f32 %v891, 0.5
    %v893 = vadd.f32 %v892, 0.5
    %v894 = vmul.f32 %v889, %v820
    %v895 = vmul.f32 %v886, %v890
    %v896 = vadd.f32 %v894, %v895
    %v897 = vtanh.pop %v896
    %v898 = vmul.f32 %v893, %v897
    %v899 = vld [vmem:[#allocation2 + $0xa0] sm:$0xff]
    %v900 = vld [vmem:[#allocation2 + $0xa8] sm:$0xff]
    %v901 = vld [vmem:[#allocation2 + $0xb0] sm:$0xff]
    %v902 = vld [vmem:[#allocation2 + $0xb8] sm:$0xff]
    %v903 = vpack.c.bf16 %v898, %v898
    %904 = vmatpush.bf16.msra.mxu0 %v488
    %905 = vmatpush.bf16.msra.mxu0 %v484
    %906 = vmatpush.bf16.msra.mxu0 %v480
    %907 = vmatpush.bf16.msra.mxu0 %v476
    %908 = vmatpush.bf16.msra.mxu0 %v472
    %909 = vmatpush.bf16.msra.mxu0 %v468
    %910 = vmatpush.bf16.msra.mxu0 %v464
    %911 = vmatpush.bf16.msra.mxu0 %v460
    %912 = vmatmul.bf16.gmra.mxu0 %v903
    %v913 = vpop.f32.mrf.mxu0
    %v914 = vadd.f32 0.0, %v913
    %v915 = vpop.f32.mrf.mxu0
    %916 = vdwg.mxu0
    %917 = vmatpush.bf16.msra.mxu0 %v489
    %918 = vmatpush.bf16.msra.mxu0 %v485
    %919 = vmatpush.bf16.msra.mxu0 %v481
    %920 = vmatpush.bf16.msra.mxu0 %v477
    %921 = vmatpush.bf16.msra.mxu0 %v473
    %922 = vmatpush.bf16.msra.mxu0 %v469
    %923 = vmatpush.bf16.msra.mxu0 %v465
    %924 = vmatpush.bf16.msra.mxu0 %v461
    %925 = vmatmul.bf16.gmra.mxu0 %v903
    %v926 = vpop.f32.mrf.mxu0
    %v927 = vadd.f32 0.0, %v926
    %v928 = vpop.f32.mrf.mxu0
    %929 = vdwg.mxu0
    %930 = vmatpush.bf16.msra.mxu0 %v490
    %931 = vmatpush.bf16.msra.mxu0 %v486
    %932 = vmatpush.bf16.msra.mxu0 %v482
    %933 = vmatpush.bf16.msra.mxu0 %v478
    %934 = vmatpush.bf16.msra.mxu0 %v474
    %935 = vmatpush.bf16.msra.mxu0 %v470
    %936 = vmatpush.bf16.msra.mxu0 %v466
    %937 = vmatpush.bf16.msra.mxu0 %v462
    %938 = vmatmul.bf16.gmra.mxu0 %v903
    %v939 = vpop.f32.mrf.mxu0
    %v940 = vadd.f32 0.0, %v939
    %v941 = vpop.f32.mrf.mxu0
    %942 = vdwg.mxu0
    %943 = vmatpush.bf16.msra.mxu0 %v491
    %944 = vmatpush.bf16.msra.mxu0 %v487
    %945 = vmatpush.bf16.msra.mxu0 %v483
    %946 = vmatpush.bf16.msra.mxu0 %v479
    %947 = vmatpush.bf16.msra.mxu0 %v475
    %948 = vmatpush.bf16.msra.mxu0 %v471
    %949 = vmatpush.bf16.msra.mxu0 %v467
    %950 = vmatpush.bf16.msra.mxu0 %v463
    %951 = vmatmul.bf16.gmra.mxu0 %v903
    %v952 = vpop.f32.mrf.mxu0
    %v953 = vadd.f32 0.0, %v952
    %v954 = vpop.f32.mrf.mxu0
    %955 = vdwg.mxu0
    %v956 = vadd.f32 %v899, %v914
    %v957 = vadd.f32 %v900, %v927
    %v958 = vadd.f32 %v901, %v940
    %v959 = vadd.f32 %v902, %v953
    %v960 = vtanh.pop %v956
    %v961 = vmul.f32 %v960, 0.5
    %v962 = vadd.f32 %v961, 0.5
    %v963 = vtanh.pop %v957
    %v964 = vmul.f32 %v963, 0.5
    %v965 = vadd.f32 %v964, 0.5
    %v966 = vtanh.pop %v958
    %v967 = vtanh.pop %v959
    %v968 = vmul.f32 %v967, 0.5
    %v969 = vadd.f32 %v968, 0.5
    %v970 = vmul.f32 %v965, %v896
    %v971 = vmul.f32 %v962, %v966
    %v972 = vadd.f32 %v970, %v971
    %v973 = vtanh.pop %v972
    %v974 = vmul.f32 %v969, %v973
    %v975 = vld [vmem:[#allocation2 + $0xc0] sm:$0xff]
    %v976 = vld [vmem:[#allocation2 + $0xc8] sm:$0xff]
    %v977 = vld [vmem:[#allocation2 + $0xd0] sm:$0xff]
    %v978 = vld [vmem:[#allocation2 + $0xd8] sm:$0xff]
    %v979 = vpack.c.bf16 %v974, %v974
    %980 = vmatpush.bf16.msra.mxu0 %v488
    %981 = vmatpush.bf16.msra.mxu0 %v484
    %982 = vmatpush.bf16.msra.mxu0 %v480
    %983 = vmatpush.bf16.msra.mxu0 %v476
    %984 = vmatpush.bf16.msra.mxu0 %v472
    %985 = vmatpush.bf16.msra.mxu0 %v468
    %986 = vmatpush.bf16.msra.mxu0 %v464
    %987 = vmatpush.bf16.msra.mxu0 %v460
    %988 = vmatmul.bf16.gmra.mxu0 %v979
    %v989 = vpop.f32.mrf.mxu0
    %v990 = vadd.f32 0.0, %v989
    %v991 = vpop.f32.mrf.mxu0
    %992 = vdwg.mxu0
    %993 = vmatpush.bf16.msra.mxu0 %v489
    %994 = vmatpush.bf16.msra.mxu0 %v485
    %995 = vmatpush.bf16.msra.mxu0 %v481
    %996 = vmatpush.bf16.msra.mxu0 %v477
    %997 = vmatpush.bf16.msra.mxu0 %v473
    %998 = vmatpush.bf16.msra.mxu0 %v469
    %999 = vmatpush.bf16.msra.mxu0 %v465
    %1000 = vmatpush.bf16.msra.mxu0 %v461
    %1001 = vmatmul.bf16.gmra.mxu0 %v979
    %v1002 = vpop.f32.mrf.mxu0
    %v1003 = vadd.f32 0.0, %v1002
    %v1004 = vpop.f32.mrf.mxu0
    %1005 = vdwg.mxu0
    %1006 = vmatpush.bf16.msra.mxu0 %v490
    %1007 = vmatpush.bf16.msra.mxu0 %v486
    %1008 = vmatpush.bf16.msra.mxu0 %v482
    %1009 = vmatpush.bf16.msra.mxu0 %v478
    %1010 = vmatpush.bf16.msra.mxu0 %v474
    %1011 = vmatpush.bf16.msra.mxu0 %v470
    %1012 = vmatpush.bf16.msra.mxu0 %v466
    %1013 = vmatpush.bf16.msra.mxu0 %v462
    %1014 = vmatmul.bf16.gmra.mxu0 %v979
    %v1015 = vpop.f32.mrf.mxu0
    %v1016 = vadd.f32 0.0, %v1015
    %v1017 = vpop.f32.mrf.mxu0
    %1018 = vdwg.mxu0
    %1019 = vmatpush.bf16.msra.mxu0 %v491
    %1020 = vmatpush.bf16.msra.mxu0 %v487
    %1021 = vmatpush.bf16.msra.mxu0 %v483
    %1022 = vmatpush.bf16.msra.mxu0 %v479
    %1023 = vmatpush.bf16.msra.mxu0 %v475
    %1024 = vmatpush.bf16.msra.mxu0 %v471
    %1025 = vmatpush.bf16.msra.mxu0 %v467
    %1026 = vmatpush.bf16.msra.mxu0 %v463
    %1027 = vmatmul.bf16.gmra.mxu0 %v979
    %v1028 = vpop.f32.mrf.mxu0
    %v1029 = vadd.f32 0.0, %v1028
    %v1030 = vpop.f32.mrf.mxu0
    %1031 = vdwg.mxu0
    %v1032 = vadd.f32 %v975, %v990
    %v1033 = vadd.f32 %v976, %v1003
    %v1034 = vadd.f32 %v977, %v1016
    %v1035 = vadd.f32 %v978, %v1029
    %v1036 = vtanh.pop %v1032
    %v1037 = vmul.f32 %v1036, 0.5
    %v1038 = vadd.f32 %v1037, 0.5
    %v1039 = vtanh.pop %v1033
    %v1040 = vmul.f32 %v1039, 0.5
    %v1041 = vadd.f32 %v1040, 0.5
    %v1042 = vtanh.pop %v1034
    %v1043 = vtanh.pop %v1035
    %v1044 = vmul.f32 %v1043, 0.5
    %v1045 = vadd.f32 %v1044, 0.5
    %v1046 = vmul.f32 %v1041, %v972
    %v1047 = vmul.f32 %v1038, %v1042
    %v1048 = vadd.f32 %v1046, %v1047
    %v1049 = vtanh.pop %v1048
    %v1050 = vmul.f32 %v1045, %v1049
    %v1051 = vld [vmem:[#allocation2 + $0xe0] sm:$0xff]
    %v1052 = vld [vmem:[#allocation2 + $0xe8] sm:$0xff]
    %v1053 = vld [vmem:[#allocation2 + $0xf0] sm:$0xff]
    %v1054 = vld [vmem:[#allocation2 + $0xf8] sm:$0xff]
    %v1055 = vpack.c.bf16 %v1050, %v1050
    %1056 = vmatpush.bf16.msra.mxu0 %v488
    %1057 = vmatpush.bf16.msra.mxu0 %v484
    %1058 = vmatpush.bf16.msra.mxu0 %v480
    %1059 = vmatpush.bf16.msra.mxu0 %v476
    %1060 = vmatpush.bf16.msra.mxu0 %v472
    %1061 = vmatpush.bf16.msra.mxu0 %v468
    %1062 = vmatpush.bf16.msra.mxu0 %v464
    %1063 = vmatpush.bf16.msra.mxu0 %v460
    %1064 = vmatmul.bf16.gmra.mxu0 %v1055
    %v1065 = vpop.f32.mrf.mxu0
    %v1066 = vadd.f32 0.0, %v1065
    %v1067 = vpop.f32.mrf.mxu0
    %1068 = vdwg.mxu0
    %1069 = vmatpush.bf16.msra.mxu0 %v489
    %1070 = vmatpush.bf16.msra.mxu0 %v485
    %1071 = vmatpush.bf16.msra.mxu0 %v481
    %1072 = vmatpush.bf16.msra.mxu0 %v477
    %1073 = vmatpush.bf16.msra.mxu0 %v473
    %1074 = vmatpush.bf16.msra.mxu0 %v469
    %1075 = vmatpush.bf16.msra.mxu0 %v465
    %1076 = vmatpush.bf16.msra.mxu0 %v461
    %1077 = vmatmul.bf16.gmra.mxu0 %v1055
    %v1078 = vpop.f32.mrf.mxu0
    %v1079 = vadd.f32 0.0, %v1078
    %v1080 = vpop.f32.mrf.mxu0
    %1081 = vdwg.mxu0
    %1082 = vmatpush.bf16.msra.mxu0 %v490
    %1083 = vmatpush.bf16.msra.mxu0 %v486
    %1084 = vmatpush.bf16.msra.mxu0 %v482
    %1085 = vmatpush.bf16.msra.mxu0 %v478
    %1086 = vmatpush.bf16.msra.mxu0 %v474
    %1087 = vmatpush.bf16.msra.mxu0 %v470
    %1088 = vmatpush.bf16.msra.mxu0 %v466
    %1089 = vmatpush.bf16.msra.mxu0 %v462
    %1090 = vmatmul.bf16.gmra.mxu0 %v1055
    %v1091 = vpop.f32.mrf.mxu0
    %v1092 = vadd.f32 0.0, %v1091
    %v1093 = vpop.f32.mrf.mxu0
    %1094 = vdwg.mxu0
    %1095 = vmatpush.bf16.msra.mxu0 %v491
    %1096 = vmatpush.bf16.msra.mxu0 %v487
    %1097 = vmatpush.bf16.msra.mxu0 %v483
    %1098 = vmatpush.bf16.msra.mxu0 %v479
    %1099 = vmatpush.bf16.msra.mxu0 %v475
    %1100 = vmatpush.bf16.msra.mxu0 %v471
    %1101 = vmatpush.bf16.msra.mxu0 %v467
    %1102 = vmatpush.bf16.msra.mxu0 %v463
    %1103 = vmatmul.bf16.gmra.mxu0 %v1055
    %v1104 = vpop.f32.mrf.mxu0
    %v1105 = vadd.f32 0.0, %v1104
    %v1106 = vpop.f32.mrf.mxu0
    %1107 = vdwg.mxu0
    %v1108 = vadd.f32 %v1051, %v1066
    %v1109 = vadd.f32 %v1052, %v1079
    %v1110 = vadd.f32 %v1053, %v1092
    %v1111 = vadd.f32 %v1054, %v1105
    %v1112 = vtanh.pop %v1108
    %v1113 = vmul.f32 %v1112, 0.5
    %v1114 = vadd.f32 %v1113, 0.5
    %v1115 = vtanh.pop %v1109
    %v1116 = vmul.f32 %v1115, 0.5
    %v1117 = vadd.f32 %v1116, 0.5
    %v1118 = vtanh.pop %v1110
    %v1119 = vtanh.pop %v1111
    %v1120 = vmul.f32 %v1119, 0.5
    %v1121 = vadd.f32 %v1120, 0.5
    %v1122 = vmul.f32 %v1117, %v1048
    %v1123 = vmul.f32 %v1114, %v1118
    %v1124 = vadd.f32 %v1122, %v1123
    %v1125 = vtanh.pop %v1124
    %v1126 = vmul.f32 %v1121, %v1125
    %v1128 = vrot.slane %v594, 1
    %v1131 = vrot.slane %v746, 7
    %v1134 = vrot.slane %v822, 6
    %v1137 = vrot.slane %v898, 5
    %v1140 = vrot.slane %v974, 4
    %v1143 = vrot.slane %v1050, 3
    %v1146 = vrot.slane %v1126, 2
    %vm1148 = vcmask 1040384
    %v1149 = vsel %vm1148, %v1128, %v670
    %vm1150 = vcmask 1041408
    %v1151 = vsel %vm1150, %v1149, %v1131
    %vm1152 = vcmask 1042432
    %v1153 = vsel %vm1152, %v1151, %v1134
    %vm1154 = vcmask 1043456
    %v1155 = vsel %vm1154, %v1153, %v1137
    %vm1156 = vcmask 1044480
    %v1157 = vsel %vm1156, %v1155, %v1140
    %vm1158 = vcmask 1045504
    %v1159 = vsel %vm1158, %v1157, %v1143
    %vm1160 = vcmask 1046528
    %v1161 = vsel %vm1160, %v1159, %v1146
    %v1162 = vld [vmem:[#allocation6] sm:$0xff]
    %v1163 = vld [vmem:[#allocation6 + $0x8] sm:$0xff]
    %v1164 = vld [vmem:[#allocation6 + $0x10] sm:$0xff]
    %v1165 = vld [vmem:[#allocation6 + $0x18] sm:$0xff]
    %v1166 = vld [vmem:[#allocation6 + $0x20] sm:$0xff]
    %v1167 = vld [vmem:[#allocation6 + $0x28] sm:$0xff]
    %v1168 = vld [vmem:[#allocation6 + $0x30] sm:$0xff]
    %v1169 = vld [vmem:[#allocation6 + $0x38] sm:$0xff]
    %v1170 = vld [vmem:[#allocation6 + $0x40] sm:$0xff]
    %v1171 = vld [vmem:[#allocation6 + $0x48] sm:$0xff]
    %v1172 = vld [vmem:[#allocation6 + $0x50] sm:$0xff]
    %v1173 = vld [vmem:[#allocation6 + $0x58] sm:$0xff]
    %v1174 = vld [vmem:[#allocation6 + $0x60] sm:$0xff]
    %v1175 = vld [vmem:[#allocation6 + $0x68] sm:$0xff]
    %v1176 = vld [vmem:[#allocation6 + $0x70] sm:$0xff]
    %v1177 = vld [vmem:[#allocation6 + $0x78] sm:$0xff]
    %v1178 = vld [vmem:[%s5] sm:$0x1]
    %v1180 = vperm.slane %v1178, 0
    %1182 = vmatpush.msra.mxu0 %v1177
    %1183 = vmatpush.msra.mxu0 %v1176
    %1184 = vmatpush.msra.mxu0 %v1175
    %1185 = vmatpush.msra.mxu0 %v1174
    %1186 = vmatpush.msra.mxu0 %v1173
    %1187 = vmatpush.msra.mxu0 %v1172
    %1188 = vmatpush.msra.mxu0 %v1171
    %1189 = vmatpush.msra.mxu0 %v1170
    %1190 = vmatpush.msra.mxu0 %v1169
    %1191 = vmatpush.msra.mxu0 %v1168
    %1192 = vmatpush.msra.mxu0 %v1167
    %1193 = vmatpush.msra.mxu0 %v1166
    %1194 = vmatpush.msra.mxu0 %v1165
    %1195 = vmatpush.msra.mxu0 %v1164
    %1196 = vmatpush.msra.mxu0 %v1163
    %1197 = vmatpush.msra.mxu0 %v1162
    %1198 = vmatmul.f32.gmra.mxu0 %v1161
    %v1199 = vpop.f32.mrf.mxu0
    %v1200 = vadd.f32 %v1180, %v1199
    %1201 = vdwg.mxu0
    %1202 = vst [vmem:[#allocation8] sm:$0xff] %v1200
    // Predicated region
    $region34: #{tpu_custom_call.1} parent=1 // pred_check
      _
    $region35: #{tpu_custom_call.1} parent=1 // pred_check_branch
      %1204 = sbr.rel (0) target = $region37
    $region36: #{tpu_custom_call.1} parent=1 // pred_region
      %1206 = vsyncadd [#allocation5], 0
      %s1208 = sshll.u32 [#allocation8], 4
      %s1209 = int_to_ptr.vmem [resolvable:$true] %s1208
      %s1210 = sshll.u32 %s6, 4
      %s1211 = int_to_ptr.hbm [resolvable:$true] %s1210
      %1213 = dma.vmem_to_hbm [thread:$0]  %s1209, 128, %s1211, [#allocation5]
    $region37: #{tpu_custom_call.1} parent=1 // pred_fallthru
      _
    // Predicated region
    $region38: #{tpu_custom_call.1} parent=1 // pred_check
      _
    $region39: #{tpu_custom_call.1} parent=1 // pred_check_branch
      %1215 = sbr.rel (0) target = $region41
    $region40: #{tpu_custom_call.1} parent=1 // pred_region
      %1217 = dma.done [#allocation5], 128
    $region41: #{tpu_custom_call.1} parent=1 // pred_fallthru
      _
    %1218 = vsyncpa [#allocation4], 1
    %1219 = vsyncpa [#allocation7], 1
    %1220 = vsyncpa [#allocation5], 1

</llo_original>
